<compile_context>
chip_gen: v6e
topology: v6e:2x2x1
jax: 0.10.0
libtpu: 0.0.40
codegen_flags: <defaults>
</compile_context>

<pallas_src>
import jax
import jax.numpy as jnp
import numpy as np
from jax.experimental import pallas as pl
from jax.experimental.pallas import tpu as pltpu

# Layer widths from the module __init__ (gc1 .. gc13)
FEAT_DIMS = [1, 16, 32, 32, 32, 32, 32, 32, 16, 16, 16, 16, 8, 1]
N_LAYERS = len(FEAT_DIMS) - 1   # 13
FMAX = 32                       # max feature width; every layer padded to 32


def gcn_group_kernel(x_ref, adj_ref, wT_ref, b_ref, o_ref):
    """All 13 GraphConv layers for one group of identical meshes (GN nodes).

    Transposed formulation:  Z = W_l^T @ H^T ; Y = Z @ A_hat + b ; H'^T = act(Y)
    which equals  act(A_hat (H W_l) + b)^T  since A_hat is symmetric.

    x_ref:   (1, GN)          f32   sensor values for this group (lane-dense)
    adj_ref: (GN, GN)         bf16  normalized block-diag group adjacency (symmetric)
    wT_ref:  (13, FMAX, FMAX) bf16  W_l^T, zero-padded
    b_ref:   (FMAX, 13)       f32   per-layer bias columns, zero-padded
    o_ref:   (1, GN)          f32   flow-front output (lane-dense)
    """
    adj = adj_ref[...]                                   # (GN, GN) bf16
    x = x_ref[...]                                       # (1, GN)  f32
    b_all = b_ref[...]                                   # (FMAX, 13) f32

    # Layer 1 (1 -> 16): column-sparse matmul replaced by a VPU outer product.
    w0 = wT_ref[0][:, 0:1].astype(jnp.float32)           # (FMAX, 1)
    z = w0 * x                                           # (FMAX, GN) f32; pad rows = 0

    h = None
    for l in range(N_LAYERS):                            # static unroll -> MXU schedule
        if l > 0:
            # Z = W_l^T @ H^T  (bf16 x bf16, f32 accumulate)
            z = jnp.dot(wT_ref[l], h, preferred_element_type=jnp.float32)
        # Y = Z @ A_hat + b   (aggregate over neighbours; A_hat symmetric)
        y = jnp.dot(z.astype(jnp.bfloat16), adj,
                    preferred_element_type=jnp.float32) + b_all[:, l:l + 1]
        if l < N_LAYERS - 1:
            h = jnp.maximum(y, 0.0).astype(jnp.bfloat16)  # F.relu, bf16 for next MXU op
        else:
            o_ref[...] = jax.nn.sigmoid(y[0:1, :])        # only the real output row


def sensor_mesh_to_flowfront(x, adj_group, wT, b, *, batch_size, nodes_per_graph,
                             graphs_per_group):
    """Wrapper: lane-dense I/O, grid over graph groups (no HBM round-trips)."""
    n_tot = batch_size * nodes_per_graph
    gn = graphs_per_group * nodes_per_graph
    assert batch_size % graphs_per_group == 0
    num_groups = batch_size // graphs_per_group

    xT = x.reshape(1, n_tot).astype(jnp.float32)          # x.view(-1, 1), lane-dense

    out = pl.pallas_call(
        gcn_group_kernel,
        out_shape=jax.ShapeDtypeStruct((1, n_tot), jnp.float32),
        grid_spec=pltpu.PrefetchScalarGridSpec(
            num_scalar_prefetch=0,
            grid=(num_groups,),
            in_specs=[
                pl.BlockSpec((1, gn), lambda g: (0, g)),                    # x group slice
                pl.BlockSpec((gn, gn), lambda g: (0, 0)),                   # shared adjacency
                pl.BlockSpec((N_LAYERS, FMAX, FMAX), lambda g: (0, 0, 0)),  # weights (resident)
                pl.BlockSpec((FMAX, N_LAYERS), lambda g: (0, 0)),           # biases (resident)
            ],
            out_specs=pl.BlockSpec((1, gn), lambda g: (0, g)),
        ),
        compiler_params=pltpu.CompilerParams(
            dimension_semantics=("parallel",)),            # use both TCs on v7x
    )(xT, adj_group, wT, b)

    return out.reshape(batch_size, nodes_per_graph)        # x.view(batch_size, -1)


def build_base_adjacency(nodes_per_graph, seed=0):
    """Deterministic per-graph mesh -> dense normalized adjacency (DGL norm='both')."""
    rng = np.random.RandomState(seed)
    n = nodes_per_graph
    a = np.zeros((n, n), np.float32)
    for i in range(n):                       # ring: every node has degree >= 1
        j = (i + 1) % n
        a[i, j] = a[j, i] = 1.0
    for _ in range(2 * n):                   # deterministic random chords
        i, j = rng.randint(0, n, size=2)
        if i != j:
            a[i, j] = a[j, i] = 1.0
    deg = a.sum(axis=1)
    dis = 1.0 / np.sqrt(deg)
    return (dis[:, None] * a) * dis[None, :]  # D^{-1/2} A D^{-1/2}, symmetric


def init_params(seed=0):
    """Xavier-uniform weights (stored transposed, bf16), small biases; zero-padded to FMAX."""
    key = jax.random.PRNGKey(seed)
    wT = np.zeros((N_LAYERS, FMAX, FMAX), np.float32)
    b = np.zeros((FMAX, N_LAYERS), np.float32)
    for l in range(N_LAYERS):
        fin, fout = FEAT_DIMS[l], FEAT_DIMS[l + 1]
        key, kw, kb = jax.random.split(key, 3)
        limit = np.sqrt(6.0 / (fin + fout))
        w = jax.random.uniform(kw, (fin, fout), jnp.float32, -limit, limit)
        wT[l, :fout, :fin] = np.asarray(w).T
        # DGL default bias init is zeros; use small random values to exercise the add.
        b[:fout, l] = np.asarray(jax.random.uniform(kb, (fout,), jnp.float32, -0.1, 0.1))
    return jnp.asarray(wT, jnp.bfloat16), jnp.asarray(b, jnp.float32)


def reference_forward(adj_base, x, wT, b, batch_size, nodes_per_graph):
    """Pure-JAX reference of the same math (same bf16 operand casts, f32 accumulate)."""
    adj_full = jnp.asarray(
        np.kron(np.eye(batch_size, dtype=np.float32), adj_base), jnp.bfloat16)
    h = x.reshape(-1, 1).astype(jnp.float32)
    for l in range(N_LAYERS):
        fin, fout = FEAT_DIMS[l], FEAT_DIMS[l + 1]
        w = wT[l, :fout, :fin].T                           # (fin, fout) bf16
        if l == 0:
            z = jnp.dot(h, w.astype(jnp.float32), preferred_element_type=jnp.float32)
        else:
            z = jnp.dot(h.astype(jnp.bfloat16), w, preferred_element_type=jnp.float32)
        y = jnp.dot(adj_full, z.astype(jnp.bfloat16),
                    preferred_element_type=jnp.float32) + b[:fout, l][None, :]
        h = jnp.maximum(y, 0.0) if l < N_LAYERS - 1 else jax.nn.sigmoid(y)
    return h[:, 0].reshape(batch_size, -1)


if __name__ == "__main__":
    batch_size = 8
    nodes_per_graph = 64
    # Group graphs so each grid step has >= 256 resident nodes (fills the 256-wide
    # MXU on v6e/v7x); the grid axis is "parallel" so v7x shards groups across TCs.
    graphs_per_group = min(batch_size, max(1, 256 // nodes_per_graph))
    n_tot = batch_size * nodes_per_graph

    adj_base = build_base_adjacency(nodes_per_graph, seed=0)
    adj_group = jnp.asarray(
        np.kron(np.eye(graphs_per_group, dtype=np.float32), adj_base), jnp.bfloat16)

    wT, b = init_params(seed=0)

    # Input sensor values: (batch_size, nodes_per_graph), as fed to forward()
    x = jax.random.normal(jax.random.PRNGKey(0), (batch_size, nodes_per_graph),
                          dtype=jnp.float32)

    out = sensor_mesh_to_flowfront(
        x, adj_group, wT, b,
        batch_size=batch_size, nodes_per_graph=nodes_per_graph,
        graphs_per_group=graphs_per_group)
    out = jax.block_until_ready(out)

    ref = reference_forward(adj_base, x, wT, b, batch_size, nodes_per_graph)
    assert out.shape == (batch_size, nodes_per_graph)
    assert jnp.allclose(out, ref, atol=2e-3, rtol=2e-3), \
        f"mismatch vs JAX reference, max abs err {float(jnp.max(jnp.abs(out - ref)))}"

    print("KERNEL_OK")
</pallas_src>

<mosaic_0001>
module attributes {stable_mosaic.version = 11 : i64} {
  func.func @gcn_group_kernel(%arg0: i32, %arg1: memref<1x256xf32, #tpu.memory_space<vmem>>, %arg2: memref<256x256xbf16, #tpu.memory_space<vmem>>, %arg3: memref<13x32x32xbf16, #tpu.memory_space<vmem>>, %arg4: memref<32x13xf32, #tpu.memory_space<vmem>>, %arg5: memref<1x256xf32, #tpu.memory_space<vmem>>) attributes {dimension_semantics = [#tpu.dimension_semantics<parallel>], iteration_bounds = array<i64: 2>, scalar_prefetch = 0 : i64, scratch_operands = 0 : i64, tpu.core_type = #tpu.core_type<tc>, window_params = [{transform_indices = @transform_0, window_bounds = array<i64: 1, 256>}, {pipeline_mode = #tpu.pipeline_mode<synchronous>, transform_indices = @transform_1, window_bounds = array<i64: 256, 256>}, {pipeline_mode = #tpu.pipeline_mode<synchronous>, transform_indices = @transform_2, window_bounds = array<i64: 13, 32, 32>}, {pipeline_mode = #tpu.pipeline_mode<synchronous>, transform_indices = @transform_3, window_bounds = array<i64: 32, 13>}, {transform_indices = @transform_4, window_bounds = array<i64: 1, 256>}]} {
    %c0 = arith.constant 0 : index
    %c0_0 = arith.constant 0 : index
    %0 = vector.load %arg2[%c0, %c0_0] : memref<256x256xbf16, #tpu.memory_space<vmem>>, vector<256x256xbf16>
    %c0_1 = arith.constant 0 : index
    %c0_2 = arith.constant 0 : index
    %1 = vector.load %arg1[%c0_1, %c0_2] : memref<1x256xf32, #tpu.memory_space<vmem>>, vector<1x256xf32>
    %c0_3 = arith.constant 0 : index
    %c0_4 = arith.constant 0 : index
    %2 = vector.load %arg4[%c0_3, %c0_4] : memref<32x13xf32, #tpu.memory_space<vmem>>, vector<32x13xf32>
    %c0_5 = arith.constant 0 : index
    %c0_6 = arith.constant 0 : index
    %c0_7 = arith.constant 0 : index
    %3 = vector.load %arg3[%c0_5, %c0_6, %c0_7] : memref<13x32x32xbf16, #tpu.memory_space<vmem>>, vector<1x32x32xbf16>
    %4 = vector.shape_cast %3 : vector<1x32x32xbf16> to vector<32x32xbf16>
    %5 = vector.extract_strided_slice %4 {offsets = [0, 0], sizes = [32, 1], strides = [1, 1]} : vector<32x32xbf16> to vector<32x1xbf16>
    %6 = arith.extf %5 : vector<32x1xbf16> to vector<32x1xf32>
    %7 = vector.broadcast %6 : vector<32x1xf32> to vector<32x256xf32>
    %8 = vector.broadcast %1 : vector<1x256xf32> to vector<32x256xf32>
    %9 = arith.mulf %7, %8 : vector<32x256xf32>
    %10 = arith.truncf %9 : vector<32x256xf32> to vector<32x256xbf16>
    %cst = arith.constant dense<0.000000e+00> : vector<32x256xf32>
    %11 = tpu.matmul %10, %0, %cst {dimension_numbers = #tpu.dot_dimension_numbers<[1], [0], [0], [1], [0, 0, 1, 1], [], []>} : vector<32x256xbf16>, vector<256x256xbf16>, vector<32x256xf32> -> vector<32x256xf32>
    %12 = vector.extract_strided_slice %2 {offsets = [0, 0], sizes = [32, 1], strides = [1, 1]} : vector<32x13xf32> to vector<32x1xf32>
    %13 = vector.broadcast %12 : vector<32x1xf32> to vector<32x256xf32>
    %14 = arith.addf %11, %13 : vector<32x256xf32>
    %cst_8 = arith.constant 0.000000e+00 : f32
    %15 = vector.broadcast %cst_8 : f32 to vector<32x256xf32>
    %16 = arith.maximumf %14, %15 : vector<32x256xf32>
    %17 = arith.truncf %16 : vector<32x256xf32> to vector<32x256xbf16>
    %c1 = arith.constant 1 : index
    %c0_9 = arith.constant 0 : index
    %c0_10 = arith.constant 0 : index
    %18 = vector.load %arg3[%c1, %c0_9, %c0_10] : memref<13x32x32xbf16, #tpu.memory_space<vmem>>, vector<1x32x32xbf16>
    %19 = vector.shape_cast %18 : vector<1x32x32xbf16> to vector<32x32xbf16>
    %cst_11 = arith.constant dense<0.000000e+00> : vector<32x256xf32>
    %20 = tpu.matmul %19, %17, %cst_11 {dimension_numbers = #tpu.dot_dimension_numbers<[1], [0], [0], [1], [0, 0, 1, 1], [], []>} : vector<32x32xbf16>, vector<32x256xbf16>, vector<32x256xf32> -> vector<32x256xf32>
    %21 = arith.truncf %20 : vector<32x256xf32> to vector<32x256xbf16>
    %cst_12 = arith.constant dense<0.000000e+00> : vector<32x256xf32>
    %22 = tpu.matmul %21, %0, %cst_12 {dimension_numbers = #tpu.dot_dimension_numbers<[1], [0], [0], [1], [0, 0, 1, 1], [], []>} : vector<32x256xbf16>, vector<256x256xbf16>, vector<32x256xf32> -> vector<32x256xf32>
    %23 = vector.extract_strided_slice %2 {offsets = [0, 1], sizes = [32, 1], strides = [1, 1]} : vector<32x13xf32> to vector<32x1xf32>
    %24 = vector.broadcast %23 : vector<32x1xf32> to vector<32x256xf32>
    %25 = arith.addf %22, %24 : vector<32x256xf32>
    %cst_13 = arith.constant 0.000000e+00 : f32
    %26 = vector.broadcast %cst_13 : f32 to vector<32x256xf32>
    %27 = arith.maximumf %25, %26 : vector<32x256xf32>
    %28 = arith.truncf %27 : vector<32x256xf32> to vector<32x256xbf16>
    %c2 = arith.constant 2 : index
    %c0_14 = arith.constant 0 : index
    %c0_15 = arith.constant 0 : index
    %29 = vector.load %arg3[%c2, %c0_14, %c0_15] : memref<13x32x32xbf16, #tpu.memory_space<vmem>>, vector<1x32x32xbf16>
    %30 = vector.shape_cast %29 : vector<1x32x32xbf16> to vector<32x32xbf16>
    %cst_16 = arith.constant dense<0.000000e+00> : vector<32x256xf32>
    %31 = tpu.matmul %30, %28, %cst_16 {dimension_numbers = #tpu.dot_dimension_numbers<[1], [0], [0], [1], [0, 0, 1, 1], [], []>} : vector<32x32xbf16>, vector<32x256xbf16>, vector<32x256xf32> -> vector<32x256xf32>
    %32 = arith.truncf %31 : vector<32x256xf32> to vector<32x256xbf16>
    %cst_17 = arith.constant dense<0.000000e+00> : vector<32x256xf32>
    %33 = tpu.matmul %32, %0, %cst_17 {dimension_numbers = #tpu.dot_dimension_numbers<[1], [0], [0], [1], [0, 0, 1, 1], [], []>} : vector<32x256xbf16>, vector<256x256xbf16>, vector<32x256xf32> -> vector<32x256xf32>
    %34 = vector.extract_strided_slice %2 {offsets = [0, 2], sizes = [32, 1], strides = [1, 1]} : vector<32x13xf32> to vector<32x1xf32>
    %35 = vector.broadcast %34 : vector<32x1xf32> to vector<32x256xf32>
    %36 = arith.addf %33, %35 : vector<32x256xf32>
    %cst_18 = arith.constant 0.000000e+00 : f32
    %37 = vector.broadcast %cst_18 : f32 to vector<32x256xf32>
    %38 = arith.maximumf %36, %37 : vector<32x256xf32>
    %39 = arith.truncf %38 : vector<32x256xf32> to vector<32x256xbf16>
    %c3 = arith.constant 3 : index
    %c0_19 = arith.constant 0 : index
    %c0_20 = arith.constant 0 : index
    %40 = vector.load %arg3[%c3, %c0_19, %c0_20] : memref<13x32x32xbf16, #tpu.memory_space<vmem>>, vector<1x32x32xbf16>
    %41 = vector.shape_cast %40 : vector<1x32x32xbf16> to vector<32x32xbf16>
    %cst_21 = arith.constant dense<0.000000e+00> : vector<32x256xf32>
    %42 = tpu.matmul %41, %39, %cst_21 {dimension_numbers = #tpu.dot_dimension_numbers<[1], [0], [0], [1], [0, 0, 1, 1], [], []>} : vector<32x32xbf16>, vector<32x256xbf16>, vector<32x256xf32> -> vector<32x256xf32>
    %43 = arith.truncf %42 : vector<32x256xf32> to vector<32x256xbf16>
    %cst_22 = arith.constant dense<0.000000e+00> : vector<32x256xf32>
    %44 = tpu.matmul %43, %0, %cst_22 {dimension_numbers = #tpu.dot_dimension_numbers<[1], [0], [0], [1], [0, 0, 1, 1], [], []>} : vector<32x256xbf16>, vector<256x256xbf16>, vector<32x256xf32> -> vector<32x256xf32>
    %45 = vector.extract_strided_slice %2 {offsets = [0, 3], sizes = [32, 1], strides = [1, 1]} : vector<32x13xf32> to vector<32x1xf32>
    %46 = vector.broadcast %45 : vector<32x1xf32> to vector<32x256xf32>
    %47 = arith.addf %44, %46 : vector<32x256xf32>
    %cst_23 = arith.constant 0.000000e+00 : f32
    %48 = vector.broadcast %cst_23 : f32 to vector<32x256xf32>
    %49 = arith.maximumf %47, %48 : vector<32x256xf32>
    %50 = arith.truncf %49 : vector<32x256xf32> to vector<32x256xbf16>
    %c4 = arith.constant 4 : index
    %c0_24 = arith.constant 0 : index
    %c0_25 = arith.constant 0 : index
    %51 = vector.load %arg3[%c4, %c0_24, %c0_25] : memref<13x32x32xbf16, #tpu.memory_space<vmem>>, vector<1x32x32xbf16>
    %52 = vector.shape_cast %51 : vector<1x32x32xbf16> to vector<32x32xbf16>
    %cst_26 = arith.constant dense<0.000000e+00> : vector<32x256xf32>
    %53 = tpu.matmul %52, %50, %cst_26 {dimension_numbers = #tpu.dot_dimension_numbers<[1], [0], [0], [1], [0, 0, 1, 1], [], []>} : vector<32x32xbf16>, vector<32x256xbf16>, vector<32x256xf32> -> vector<32x256xf32>
    %54 = arith.truncf %53 : vector<32x256xf32> to vector<32x256xbf16>
    %cst_27 = arith.constant dense<0.000000e+00> : vector<32x256xf32>
    %55 = tpu.matmul %54, %0, %cst_27 {dimension_numbers = #tpu.dot_dimension_numbers<[1], [0], [0], [1], [0, 0, 1, 1], [], []>} : vector<32x256xbf16>, vector<256x256xbf16>, vector<32x256xf32> -> vector<32x256xf32>
    %56 = vector.extract_strided_slice %2 {offsets = [0, 4], sizes = [32, 1], strides = [1, 1]} : vector<32x13xf32> to vector<32x1xf32>
    %57 = vector.broadcast %56 : vector<32x1xf32> to vector<32x256xf32>
    %58 = arith.addf %55, %57 : vector<32x256xf32>
    %cst_28 = arith.constant 0.000000e+00 : f32
    %59 = vector.broadcast %cst_28 : f32 to vector<32x256xf32>
    %60 = arith.maximumf %58, %59 : vector<32x256xf32>
    %61 = arith.truncf %60 : vector<32x256xf32> to vector<32x256xbf16>
    %c5 = arith.constant 5 : index
    %c0_29 = arith.constant 0 : index
    %c0_30 = arith.constant 0 : index
    %62 = vector.load %arg3[%c5, %c0_29, %c0_30] : memref<13x32x32xbf16, #tpu.memory_space<vmem>>, vector<1x32x32xbf16>
    %63 = vector.shape_cast %62 : vector<1x32x32xbf16> to vector<32x32xbf16>
    %cst_31 = arith.constant dense<0.000000e+00> : vector<32x256xf32>
    %64 = tpu.matmul %63, %61, %cst_31 {dimension_numbers = #tpu.dot_dimension_numbers<[1], [0], [0], [1], [0, 0, 1, 1], [], []>} : vector<32x32xbf16>, vector<32x256xbf16>, vector<32x256xf32> -> vector<32x256xf32>
    %65 = arith.truncf %64 : vector<32x256xf32> to vector<32x256xbf16>
    %cst_32 = arith.constant dense<0.000000e+00> : vector<32x256xf32>
    %66 = tpu.matmul %65, %0, %cst_32 {dimension_numbers = #tpu.dot_dimension_numbers<[1], [0], [0], [1], [0, 0, 1, 1], [], []>} : vector<32x256xbf16>, vector<256x256xbf16>, vector<32x256xf32> -> vector<32x256xf32>
    %67 = vector.extract_strided_slice %2 {offsets = [0, 5], sizes = [32, 1], strides = [1, 1]} : vector<32x13xf32> to vector<32x1xf32>
    %68 = vector.broadcast %67 : vector<32x1xf32> to vector<32x256xf32>
    %69 = arith.addf %66, %68 : vector<32x256xf32>
    %cst_33 = arith.constant 0.000000e+00 : f32
    %70 = vector.broadcast %cst_33 : f32 to vector<32x256xf32>
    %71 = arith.maximumf %69, %70 : vector<32x256xf32>
    %72 = arith.truncf %71 : vector<32x256xf32> to vector<32x256xbf16>
    %c6 = arith.constant 6 : index
    %c0_34 = arith.constant 0 : index
    %c0_35 = arith.constant 0 : index
    %73 = vector.load %arg3[%c6, %c0_34, %c0_35] : memref<13x32x32xbf16, #tpu.memory_space<vmem>>, vector<1x32x32xbf16>
    %74 = vector.shape_cast %73 : vector<1x32x32xbf16> to vector<32x32xbf16>
    %cst_36 = arith.constant dense<0.000000e+00> : vector<32x256xf32>
    %75 = tpu.matmul %74, %72, %cst_36 {dimension_numbers = #tpu.dot_dimension_numbers<[1], [0], [0], [1], [0, 0, 1, 1], [], []>} : vector<32x32xbf16>, vector<32x256xbf16>, vector<32x256xf32> -> vector<32x256xf32>
    %76 = arith.truncf %75 : vector<32x256xf32> to vector<32x256xbf16>
    %cst_37 = arith.constant dense<0.000000e+00> : vector<32x256xf32>
    %77 = tpu.matmul %76, %0, %cst_37 {dimension_numbers = #tpu.dot_dimension_numbers<[1], [0], [0], [1], [0, 0, 1, 1], [], []>} : vector<32x256xbf16>, vector<256x256xbf16>, vector<32x256xf32> -> vector<32x256xf32>
    %78 = vector.extract_strided_slice %2 {offsets = [0, 6], sizes = [32, 1], strides = [1, 1]} : vector<32x13xf32> to vector<32x1xf32>
    %79 = vector.broadcast %78 : vector<32x1xf32> to vector<32x256xf32>
    %80 = arith.addf %77, %79 : vector<32x256xf32>
    %cst_38 = arith.constant 0.000000e+00 : f32
    %81 = vector.broadcast %cst_38 : f32 to vector<32x256xf32>
    %82 = arith.maximumf %80, %81 : vector<32x256xf32>
    %83 = arith.truncf %82 : vector<32x256xf32> to vector<32x256xbf16>
    %c7 = arith.constant 7 : index
    %c0_39 = arith.constant 0 : index
    %c0_40 = arith.constant 0 : index
    %84 = vector.load %arg3[%c7, %c0_39, %c0_40] : memref<13x32x32xbf16, #tpu.memory_space<vmem>>, vector<1x32x32xbf16>
    %85 = vector.shape_cast %84 : vector<1x32x32xbf16> to vector<32x32xbf16>
    %cst_41 = arith.constant dense<0.000000e+00> : vector<32x256xf32>
    %86 = tpu.matmul %85, %83, %cst_41 {dimension_numbers = #tpu.dot_dimension_numbers<[1], [0], [0], [1], [0, 0, 1, 1], [], []>} : vector<32x32xbf16>, vector<32x256xbf16>, vector<32x256xf32> -> vector<32x256xf32>
    %87 = arith.truncf %86 : vector<32x256xf32> to vector<32x256xbf16>
    %cst_42 = arith.constant dense<0.000000e+00> : vector<32x256xf32>
    %88 = tpu.matmul %87, %0, %cst_42 {dimension_numbers = #tpu.dot_dimension_numbers<[1], [0], [0], [1], [0, 0, 1, 1], [], []>} : vector<32x256xbf16>, vector<256x256xbf16>, vector<32x256xf32> -> vector<32x256xf32>
    %89 = vector.extract_strided_slice %2 {offsets = [0, 7], sizes = [32, 1], strides = [1, 1]} : vector<32x13xf32> to vector<32x1xf32>
    %90 = vector.broadcast %89 : vector<32x1xf32> to vector<32x256xf32>
    %91 = arith.addf %88, %90 : vector<32x256xf32>
    %cst_43 = arith.constant 0.000000e+00 : f32
    %92 = vector.broadcast %cst_43 : f32 to vector<32x256xf32>
    %93 = arith.maximumf %91, %92 : vector<32x256xf32>
    %94 = arith.truncf %93 : vector<32x256xf32> to vector<32x256xbf16>
    %c8 = arith.constant 8 : index
    %c0_44 = arith.constant 0 : index
    %c0_45 = arith.constant 0 : index
    %95 = vector.load %arg3[%c8, %c0_44, %c0_45] : memref<13x32x32xbf16, #tpu.memory_space<vmem>>, vector<1x32x32xbf16>
    %96 = vector.shape_cast %95 : vector<1x32x32xbf16> to vector<32x32xbf16>
    %cst_46 = arith.constant dense<0.000000e+00> : vector<32x256xf32>
    %97 = tpu.matmul %96, %94, %cst_46 {dimension_numbers = #tpu.dot_dimension_numbers<[1], [0], [0], [1], [0, 0, 1, 1], [], []>} : vector<32x32xbf16>, vector<32x256xbf16>, vector<32x256xf32> -> vector<32x256xf32>
    %98 = arith.truncf %97 : vector<32x256xf32> to vector<32x256xbf16>
    %cst_47 = arith.constant dense<0.000000e+00> : vector<32x256xf32>
    %99 = tpu.matmul %98, %0, %cst_47 {dimension_numbers = #tpu.dot_dimension_numbers<[1], [0], [0], [1], [0, 0, 1, 1], [], []>} : vector<32x256xbf16>, vector<256x256xbf16>, vector<32x256xf32> -> vector<32x256xf32>
    %100 = vector.extract_strided_slice %2 {offsets = [0, 8], sizes = [32, 1], strides = [1, 1]} : vector<32x13xf32> to vector<32x1xf32>
    %101 = vector.broadcast %100 : vector<32x1xf32> to vector<32x256xf32>
    %102 = arith.addf %99, %101 : vector<32x256xf32>
    %cst_48 = arith.constant 0.000000e+00 : f32
    %103 = vector.broadcast %cst_48 : f32 to vector<32x256xf32>
    %104 = arith.maximumf %102, %103 : vector<32x256xf32>
    %105 = arith.truncf %104 : vector<32x256xf32> to vector<32x256xbf16>
    %c9 = arith.constant 9 : index
    %c0_49 = arith.constant 0 : index
    %c0_50 = arith.constant 0 : index
    %106 = vector.load %arg3[%c9, %c0_49, %c0_50] : memref<13x32x32xbf16, #tpu.memory_space<vmem>>, vector<1x32x32xbf16>
    %107 = vector.shape_cast %106 : vector<1x32x32xbf16> to vector<32x32xbf16>
    %cst_51 = arith.constant dense<0.000000e+00> : vector<32x256xf32>
    %108 = tpu.matmul %107, %105, %cst_51 {dimension_numbers = #tpu.dot_dimension_numbers<[1], [0], [0], [1], [0, 0, 1, 1], [], []>} : vector<32x32xbf16>, vector<32x256xbf16>, vector<32x256xf32> -> vector<32x256xf32>
    %109 = arith.truncf %108 : vector<32x256xf32> to vector<32x256xbf16>
    %cst_52 = arith.constant dense<0.000000e+00> : vector<32x256xf32>
    %110 = tpu.matmul %109, %0, %cst_52 {dimension_numbers = #tpu.dot_dimension_numbers<[1], [0], [0], [1], [0, 0, 1, 1], [], []>} : vector<32x256xbf16>, vector<256x256xbf16>, vector<32x256xf32> -> vector<32x256xf32>
    %111 = vector.extract_strided_slice %2 {offsets = [0, 9], sizes = [32, 1], strides = [1, 1]} : vector<32x13xf32> to vector<32x1xf32>
    %112 = vector.broadcast %111 : vector<32x1xf32> to vector<32x256xf32>
    %113 = arith.addf %110, %112 : vector<32x256xf32>
    %cst_53 = arith.constant 0.000000e+00 : f32
    %114 = vector.broadcast %cst_53 : f32 to vector<32x256xf32>
    %115 = arith.maximumf %113, %114 : vector<32x256xf32>
    %116 = arith.truncf %115 : vector<32x256xf32> to vector<32x256xbf16>
    %c10 = arith.constant 10 : index
    %c0_54 = arith.constant 0 : index
    %c0_55 = arith.constant 0 : index
    %117 = vector.load %arg3[%c10, %c0_54, %c0_55] : memref<13x32x32xbf16, #tpu.memory_space<vmem>>, vector<1x32x32xbf16>
    %118 = vector.shape_cast %117 : vector<1x32x32xbf16> to vector<32x32xbf16>
    %cst_56 = arith.constant dense<0.000000e+00> : vector<32x256xf32>
    %119 = tpu.matmul %118, %116, %cst_56 {dimension_numbers = #tpu.dot_dimension_numbers<[1], [0], [0], [1], [0, 0, 1, 1], [], []>} : vector<32x32xbf16>, vector<32x256xbf16>, vector<32x256xf32> -> vector<32x256xf32>
    %120 = arith.truncf %119 : vector<32x256xf32> to vector<32x256xbf16>
    %cst_57 = arith.constant dense<0.000000e+00> : vector<32x256xf32>
    %121 = tpu.matmul %120, %0, %cst_57 {dimension_numbers = #tpu.dot_dimension_numbers<[1], [0], [0], [1], [0, 0, 1, 1], [], []>} : vector<32x256xbf16>, vector<256x256xbf16>, vector<32x256xf32> -> vector<32x256xf32>
    %122 = vector.extract_strided_slice %2 {offsets = [0, 10], sizes = [32, 1], strides = [1, 1]} : vector<32x13xf32> to vector<32x1xf32>
    %123 = vector.broadcast %122 : vector<32x1xf32> to vector<32x256xf32>
    %124 = arith.addf %121, %123 : vector<32x256xf32>
    %cst_58 = arith.constant 0.000000e+00 : f32
    %125 = vector.broadcast %cst_58 : f32 to vector<32x256xf32>
    %126 = arith.maximumf %124, %125 : vector<32x256xf32>
    %127 = arith.truncf %126 : vector<32x256xf32> to vector<32x256xbf16>
    %c11 = arith.constant 11 : index
    %c0_59 = arith.constant 0 : index
    %c0_60 = arith.constant 0 : index
    %128 = vector.load %arg3[%c11, %c0_59, %c0_60] : memref<13x32x32xbf16, #tpu.memory_space<vmem>>, vector<1x32x32xbf16>
    %129 = vector.shape_cast %128 : vector<1x32x32xbf16> to vector<32x32xbf16>
    %cst_61 = arith.constant dense<0.000000e+00> : vector<32x256xf32>
    %130 = tpu.matmul %129, %127, %cst_61 {dimension_numbers = #tpu.dot_dimension_numbers<[1], [0], [0], [1], [0, 0, 1, 1], [], []>} : vector<32x32xbf16>, vector<32x256xbf16>, vector<32x256xf32> -> vector<32x256xf32>
    %131 = arith.truncf %130 : vector<32x256xf32> to vector<32x256xbf16>
    %cst_62 = arith.constant dense<0.000000e+00> : vector<32x256xf32>
    %132 = tpu.matmul %131, %0, %cst_62 {dimension_numbers = #tpu.dot_dimension_numbers<[1], [0], [0], [1], [0, 0, 1, 1], [], []>} : vector<32x256xbf16>, vector<256x256xbf16>, vector<32x256xf32> -> vector<32x256xf32>
    %133 = vector.extract_strided_slice %2 {offsets = [0, 11], sizes = [32, 1], strides = [1, 1]} : vector<32x13xf32> to vector<32x1xf32>
    %134 = vector.broadcast %133 : vector<32x1xf32> to vector<32x256xf32>
    %135 = arith.addf %132, %134 : vector<32x256xf32>
    %cst_63 = arith.constant 0.000000e+00 : f32
    %136 = vector.broadcast %cst_63 : f32 to vector<32x256xf32>
    %137 = arith.maximumf %135, %136 : vector<32x256xf32>
    %138 = arith.truncf %137 : vector<32x256xf32> to vector<32x256xbf16>
    %c12 = arith.constant 12 : index
    %c0_64 = arith.constant 0 : index
    %c0_65 = arith.constant 0 : index
    %139 = vector.load %arg3[%c12, %c0_64, %c0_65] : memref<13x32x32xbf16, #tpu.memory_space<vmem>>, vector<1x32x32xbf16>
    %140 = vector.shape_cast %139 : vector<1x32x32xbf16> to vector<32x32xbf16>
    %cst_66 = arith.constant dense<0.000000e+00> : vector<32x256xf32>
    %141 = tpu.matmul %140, %138, %cst_66 {dimension_numbers = #tpu.dot_dimension_numbers<[1], [0], [0], [1], [0, 0, 1, 1], [], []>} : vector<32x32xbf16>, vector<32x256xbf16>, vector<32x256xf32> -> vector<32x256xf32>
    %142 = arith.truncf %141 : vector<32x256xf32> to vector<32x256xbf16>
    %cst_67 = arith.constant dense<0.000000e+00> : vector<32x256xf32>
    %143 = tpu.matmul %142, %0, %cst_67 {dimension_numbers = #tpu.dot_dimension_numbers<[1], [0], [0], [1], [0, 0, 1, 1], [], []>} : vector<32x256xbf16>, vector<256x256xbf16>, vector<32x256xf32> -> vector<32x256xf32>
    %144 = vector.extract_strided_slice %2 {offsets = [0, 12], sizes = [32, 1], strides = [1, 1]} : vector<32x13xf32> to vector<32x1xf32>
    %145 = vector.broadcast %144 : vector<32x1xf32> to vector<32x256xf32>
    %146 = arith.addf %143, %145 : vector<32x256xf32>
    %147 = vector.extract_strided_slice %146 {offsets = [0, 0], sizes = [1, 256], strides = [1, 1]} : vector<32x256xf32> to vector<1x256xf32>
    %148 = arith.negf %147 : vector<1x256xf32>
    %149 = math.exp %148 : vector<1x256xf32>
    %cst_68 = arith.constant 1.000000e+00 : f32
    %150 = vector.broadcast %cst_68 : f32 to vector<1x256xf32>
    %151 = arith.addf %150, %149 : vector<1x256xf32>
    %152 = arith.divf %150, %151 : vector<1x256xf32>
    %c0_69 = arith.constant 0 : index
    %c0_70 = arith.constant 0 : index
    %153 = vector.load %arg5[%c0_69, %c0_70] : memref<1x256xf32, #tpu.memory_space<vmem>>, vector<1x256xf32>
    tpu.vector_store %arg5[%c0_69, %c0_70], %152 {strides = array<i32>} : memref<1x256xf32, #tpu.memory_space<vmem>>, vector<1x256xf32>,
    return
  }
  func.func @transform_0(%arg0: i32) -> (i32, i32) {
    %c0_i32 = arith.constant 0 : i32
    %c0_i32_0 = arith.constant 0 : i32
    return %c0_i32, %arg0 : i32, i32
  }
  func.func @transform_1(%arg0: i32) -> (i32, i32) {
    %c0_i32 = arith.constant 0 : i32
    %c0_i32_0 = arith.constant 0 : i32
    %c0_i32_1 = arith.constant 0 : i32
    return %c0_i32, %c0_i32_0 : i32, i32
  }
  func.func @transform_2(%arg0: i32) -> (i32, i32, i32) {
    %c0_i32 = arith.constant 0 : i32
    %c0_i32_0 = arith.constant 0 : i32
    %c0_i32_1 = arith.constant 0 : i32
    %c0_i32_2 = arith.constant 0 : i32
    return %c0_i32, %c0_i32_0, %c0_i32_1 : i32, i32, i32
  }
  func.func @transform_3(%arg0: i32) -> (i32, i32) {
    %c0_i32 = arith.constant 0 : i32
    %c0_i32_0 = arith.constant 0 : i32
    %c0_i32_1 = arith.constant 0 : i32
    return %c0_i32, %c0_i32_0 : i32, i32
  }
  func.func @transform_4(%arg0: i32) -> (i32, i32) {
    %c0_i32 = arith.constant 0 : i32
    %c0_i32_0 = arith.constant 0 : i32
    return %c0_i32, %arg0 : i32, i32
  }
}

</mosaic_0001>

<llo_original>
// kernel: tpu_custom_call.1
$region0: #{tpu_custom_call.1}
  #allocation0 [shape = 'u32[]', space=smem, size = 0x4, offset = 0x4, fixed_abs, tag = 'smem constant byte address 0x4 - core index']
  #allocation1 [shape = 'u32[144,128]{1,0:T(1,128)}', space=vmem, size = 0x12000, scoped, tag = 'internal scratch']
  %s0 = inlined_call_operand.vmem [shape: f32[1,512], index: 0, kind: input, shape index: {}]
  %s1 = inlined_call_operand.hbm [shape: bf16[256,256], index: 1, kind: input, shape index: {}]
  %s2 = inlined_call_operand.hbm [shape: bf16[13,32,32], index: 2, kind: input, shape index: {}]
  %s3 = inlined_call_operand.vmem [shape: f32[32,13], index: 3, kind: input, shape index: {}]
  %s4 = inlined_call_operand.hbm [shape: f32[1,512], index: 4, kind: output, shape index: {}]
  %s5 = sld [smem:[#allocation0]]
  $region57: #{tpu_custom_call.1} parent=0
    _
  %s7 = ssub.s32 1, %s5
  %s8 = scalar_select 0, %s7, %s5
  $region1: #{tpu_custom_call.1} parent=0
    #allocation2 [shape = 'u8[131072]{0}', space=vmem, size = 0x20000, scoped, tag = 'input window, operand 1, single buffered']
    #allocation3 [shape = 's32[2]{0}', space=sflag, size = 0x8, scoped, tag = 'scoped memory for tpu_custom_call.1']
    #allocation4 [shape = 's32[2]{0}', space=sflag, size = 0x8, scoped, tag = 'scoped memory for tpu_custom_call.1']
    #allocation5 [shape = 'u8[106496]{0}', space=vmem, size = 0x1a000, scoped, tag = 'input window, operand 2, single buffered']
    #allocation6 [shape = 's32[1]{0}', space=sflag, size = 0x4, scoped, tag = 'scoped memory for tpu_custom_call.1']
    #allocation7 [shape = 'u8[2048]{0}', space=vmem, size = 0x800, scoped, tag = 'output window, operand 0']
    %9 = vsyncpa [#allocation3], 0
    %10 = vsyncpa [#allocation6], 0
    %11 = vsyncpa [#allocation4], 0
    %s12 = scalar_lea.sflag [#allocation4], 1
    %13 = vsyncpa %s12, 0
    loop: start=0, step=1, limit=4
    $region2: #{tpu_custom_call.1} parent=1 // loop_pre_header
      _
    $region3: #{tpu_custom_call.1} parent=1 // loop_header
      %s15 = sphi 0, %s19
      %p16 = scmp.ge.s32.totalorder %s15, 4
      %s25 = sphi 0, %s27
      %s28 = sphi 0, %s25
      %s29 = sphi 0, %s28
      %s45 = sphi 0, %s29
      %s49 = sphi 0, %s49
      %s51 = sphi 0, %s49
      %s52 = sphi 0, %s51
      %s66 = sphi 0, %s52
      %s70 = sphi 0, %s70
      %s72 = sphi 0, %s70
      %s73 = sphi 0, %s72
      %s87 = sphi 0, %s73
      %s91 = sphi 0, %s91
      %s93 = sphi 0, %s91
      %s94 = sphi 0, %s93
      %s108 = sphi 0, %s94
      %s114 = sphi 0, %s116
      %s117 = sphi 0, %s114
      %s118 = sphi 0, %s117
      %s134 = sphi 0, %s118
    $region4: #{tpu_custom_call.1} parent=1 // loop_header_branch
      %18 = sbr.rel (%p16) target = $region8
    $region5: #{tpu_custom_call.1} parent=1 // loop_body
      %s20 = ssub.s32 %s15, 1
      %s21 = ssub.s32 %s15, 2
      %s22 = sadd.s32 %s15, 1
      %s23 = ssub.s32 %s15, %s22
      %p24 = scmp.eq.s32.totalorder %s23, 0
      %s26 = sadd.s32 %s25, 1
      %s27 = scalar_select %p24, %s25, %s26
      %p30 = pneg %p24
      %p31 = scmp.eq.s32.totalorder %s15, 1
      %p32 = por %p30, %p31
      %p33 = scmp.ne.s32.totalorder %s25, %s28
      %p34 = scmp.eq.s32.totalorder %s15, 0
      %p35 = por %p33, %p34
      %p36 = scmp.ne.s32.totalorder %s25, %s28
      %p37 = scmp.eq.s32.totalorder %s20, 1
      %p38 = por %p36, %p37
      %p39 = scmp.ne.s32.totalorder %s28, %s29
      %p40 = scmp.eq.s32.totalorder %s20, 0
      %p41 = por %p39, %p40
      %p42 = scmp.ne.s32.totalorder %s28, %s29
      %p43 = scmp.eq.s32.totalorder %s21, 1
      %p44 = por %p42, %p43
      %p46 = scmp.ne.s32.totalorder %s29, %s45
      %p47 = scmp.eq.s32.totalorder %s21, 0
      %p48 = por %p46, %p47
      %s50 = sadd.s32 %s49, 1
      %p53 = scmp.eq.s32.totalorder %s15, 1
      %p54 = scmp.ne.s32.totalorder %s49, %s51
      %p55 = scmp.eq.s32.totalorder %s15, 0
      %p56 = por %p54, %p55
      %p57 = scmp.ne.s32.totalorder %s49, %s51
      %p58 = scmp.eq.s32.totalorder %s20, 1
      %p59 = por %p57, %p58
      %p60 = scmp.ne.s32.totalorder %s51, %s52
      %p61 = scmp.eq.s32.totalorder %s20, 0
      %p62 = por %p60, %p61
      %p63 = scmp.ne.s32.totalorder %s51, %s52
      %p64 = scmp.eq.s32.totalorder %s21, 1
      %p65 = por %p63, %p64
      %p67 = scmp.ne.s32.totalorder %s52, %s66
      %p68 = scmp.eq.s32.totalorder %s21, 0
      %p69 = por %p67, %p68
      %s71 = sadd.s32 %s70, 1
      %p74 = scmp.eq.s32.totalorder %s15, 1
      %p75 = scmp.ne.s32.totalorder %s70, %s72
      %p76 = scmp.eq.s32.totalorder %s15, 0
      %p77 = por %p75, %p76
      %p78 = scmp.ne.s32.totalorder %s70, %s72
      %p79 = scmp.eq.s32.totalorder %s20, 1
      %p80 = por %p78, %p79
      %p81 = scmp.ne.s32.totalorder %s72, %s73
      %p82 = scmp.eq.s32.totalorder %s20, 0
      %p83 = por %p81, %p82
      %p84 = scmp.ne.s32.totalorder %s72, %s73
      %p85 = scmp.eq.s32.totalorder %s21, 1
      %p86 = por %p84, %p85
      %p88 = scmp.ne.s32.totalorder %s73, %s87
      %p89 = scmp.eq.s32.totalorder %s21, 0
      %p90 = por %p88, %p89
      %s92 = sadd.s32 %s91, 1
      %p95 = scmp.eq.s32.totalorder %s15, 1
      %p96 = scmp.ne.s32.totalorder %s91, %s93
      %p97 = scmp.eq.s32.totalorder %s15, 0
      %p98 = por %p96, %p97
      %p99 = scmp.ne.s32.totalorder %s91, %s93
      %p100 = scmp.eq.s32.totalorder %s20, 1
      %p101 = por %p99, %p100
      %p102 = scmp.ne.s32.totalorder %s93, %s94
      %p103 = scmp.eq.s32.totalorder %s20, 0
      %p104 = por %p102, %p103
      %p105 = scmp.ne.s32.totalorder %s93, %s94
      %p106 = scmp.eq.s32.totalorder %s21, 1
      %p107 = por %p105, %p106
      %p109 = scmp.ne.s32.totalorder %s94, %s108
      %p110 = scmp.eq.s32.totalorder %s21, 0
      %p111 = por %p109, %p110
      %s112 = ssub.s32 %s15, %s22
      %p113 = scmp.eq.s32.totalorder %s112, 0
      %s115 = sadd.s32 %s114, 1
      %s116 = scalar_select %p113, %s114, %s115
      %p119 = pneg %p113
      %p120 = scmp.eq.s32.totalorder %s15, 1
      %p121 = por %p119, %p120
      %p122 = scmp.ne.s32.totalorder %s114, %s117
      %p123 = scmp.eq.s32.totalorder %s15, 0
      %p124 = por %p122, %p123
      %p125 = scmp.ne.s32.totalorder %s114, %s117
      %p126 = scmp.eq.s32.totalorder %s20, 1
      %p127 = por %p125, %p126
      %p128 = scmp.ne.s32.totalorder %s117, %s118
      %p129 = scmp.eq.s32.totalorder %s20, 0
      %p130 = por %p128, %p129
      %p131 = scmp.ne.s32.totalorder %s117, %s118
      %p132 = scmp.eq.s32.totalorder %s21, 1
      %p133 = por %p131, %p132
      %p135 = scmp.ne.s32.totalorder %s118, %s134
      %p136 = scmp.eq.s32.totalorder %s21, 0
      %p137 = por %p135, %p136
      %p138 = scmp.le.s32.totalorder 1, %s15
      %p139 = scmp.lt.s32.totalorder %s15, 3
      %p140 = pnand %p138, %p139
      %p141 = pneg %p140
      // Predicated region
      $region9: #{tpu_custom_call.1} parent=5 // pred_check
        _
      $region10: #{tpu_custom_call.1} parent=5 // pred_check_branch
        %143 = sbr.rel (%p140) target = $region12
      $region11: #{tpu_custom_call.1} parent=5 // pred_region
        %s144 = ssub.s32 %s15, 1
        // Predicated region
        $region13: #{tpu_custom_call.1} parent=11 // pred_check
          %p145 = pneg %p62
        $region14: #{tpu_custom_call.1} parent=11 // pred_check_branch
          %147 = sbr.rel (%p145) target = $region16
        $region15: #{tpu_custom_call.1} parent=11 // pred_region
          %s149 = ssub.s32 4096, 4096
          %150 = vsyncadd [#allocation3], %s149
          %s151 = sshll.u32 [#allocation2], 4
          %s152 = int_to_ptr.vmem [resolvable:$true] %s151
          %157 = dma.hbm_to_vmem [thread:$0]  %s1, 4096, %s152, [#allocation3], 128, 128, 8
        $region16: #{tpu_custom_call.1} parent=11 // pred_fallthru
          _
        // Predicated region
        $region17: #{tpu_custom_call.1} parent=11 // pred_check
          %p158 = pneg %p83
        $region18: #{tpu_custom_call.1} parent=11 // pred_check_branch
          %160 = sbr.rel (%p158) target = $region20
        $region19: #{tpu_custom_call.1} parent=11 // pred_region
          %s162 = ssub.s32 3328, 3328
          %163 = vsyncadd [#allocation6], %s162
          %s164 = sshll.u32 [#allocation5], 4
          %s165 = int_to_ptr.vmem [resolvable:$true] %s164
          %170 = dma.hbm_to_vmem [thread:$0]  %s2, 3328, %s165, [#allocation6], 64, 64, 4
        $region20: #{tpu_custom_call.1} parent=11 // pred_fallthru
          _
        // Predicated region
        $region21: #{tpu_custom_call.1} parent=11 // pred_check
          %p171 = pneg %p104
        $region22: #{tpu_custom_call.1} parent=11 // pred_check_branch
          %173 = sbr.rel (%p171) target = $region24
        $region23: #{tpu_custom_call.1} parent=11 // pred_region
          _
        $region24: #{tpu_custom_call.1} parent=11 // pred_fallthru
          _
      $region12: #{tpu_custom_call.1} parent=5 // pred_fallthru
        _
      %p174 = scmp.lt.s32.totalorder %s15, 2
      // Predicated region
      $region25: #{tpu_custom_call.1} parent=5 // pred_check
        %p175 = pneg %p174
      $region26: #{tpu_custom_call.1} parent=5 // pred_check_branch
        %177 = sbr.rel (%p175) target = $region28
      $region27: #{tpu_custom_call.1} parent=5 // pred_region
        // Predicated region
        $region29: #{tpu_custom_call.1} parent=27 // pred_check
          %p178 = pneg %p35
        $region30: #{tpu_custom_call.1} parent=27 // pred_check_branch
          %180 = sbr.rel (%p178) target = $region32
        $region31: #{tpu_custom_call.1} parent=27 // pred_region
          %s181 = smul.u32 2, %s15
          %p182 = scmp.lt.s32.totalorder %s181, 3
          %s183 = scalar_select %p182, %s181, 3
          %s184 = scalar_lea.vmem %s0, %s183
          %s185 = smul.u32 2, %s15
        $region32: #{tpu_custom_call.1} parent=27 // pred_fallthru
          _
      $region28: #{tpu_custom_call.1} parent=5 // pred_fallthru
        _
      %p186 = scmp.le.s32.totalorder 1, %s15
      %p187 = scmp.lt.s32.totalorder %s15, 3
      %p188 = pnand %p186, %p187
      %p189 = pneg %p188
      // Predicated region
      $region33: #{tpu_custom_call.1} parent=5 // pred_check
        _
      $region34: #{tpu_custom_call.1} parent=5 // pred_check_branch
        %191 = sbr.rel (%p188) target = $region36
      $region35: #{tpu_custom_call.1} parent=5 // pred_region
        %s192 = ssub.s32 %s15, 1
        // Predicated region
        $region37: #{tpu_custom_call.1} parent=35 // pred_check
          %p193 = pneg %p62
        $region38: #{tpu_custom_call.1} parent=35 // pred_check_branch
          %195 = sbr.rel (%p193) target = $region40
        $region39: #{tpu_custom_call.1} parent=35 // pred_region
          %196 = dma.done [#allocation3], 4096
        $region40: #{tpu_custom_call.1} parent=35 // pred_fallthru
          _
        // Predicated region
        $region41: #{tpu_custom_call.1} parent=35 // pred_check
          %p197 = pneg %p83
        $region42: #{tpu_custom_call.1} parent=35 // pred_check_branch
          %199 = sbr.rel (%p197) target = $region44
        $region43: #{tpu_custom_call.1} parent=35 // pred_region
          %200 = dma.done [#allocation6], 3328
        $region44: #{tpu_custom_call.1} parent=35 // pred_fallthru
          _
        %s201 = smul.u32 2, %s20
        %p202 = scmp.lt.s32.totalorder %s201, 3
        %s203 = scalar_select %p202, %s201, 3
        %s204 = scalar_lea.vmem %s0, %s203
        %p205 = pneg %p41
        %p206 = pneg %p38
        %p207 = pneg %p62
        %p208 = pneg %p59
        %p209 = pneg %p83
        %p210 = pneg %p80
        %p211 = pneg %p104
        %p212 = pneg %p101
        %p213 = pneg %p130
        %p214 = pneg %p127
        %s215 = sand.u32 %s117, 1
        %s216 = scalar_lea.sflag [#allocation4], %s215
        %s217 = sand.u32 %s117, 1
        %s218 = smul.addr %s217, 2
        %s219 = scalar_lea.vmem [#allocation7], %s218
        %s220 = smul.u32 2, %s20
        %p221 = scmp.lt.s32.totalorder %s220, 3
        %s222 = scalar_select %p221, %s220, 3
        %s223 = scalar_lea.vmem %s0, %s222
        %s224 = smul.u32 2, %s20
        %s225 = smul.u32 2, %s20
        %v227 = vld [vmem:[#allocation2] sm:$0xff]
        %v228 = vld [vmem:[#allocation2 + $0x8] sm:$0xff]
        %v229 = vld [vmem:[#allocation2 + $0x10] sm:$0xff]
        %v230 = vld [vmem:[#allocation2 + $0x18] sm:$0xff]
        %v231 = vld [vmem:[#allocation2 + $0x20] sm:$0xff]
        %v232 = vld [vmem:[#allocation2 + $0x28] sm:$0xff]
        %v233 = vld [vmem:[#allocation2 + $0x30] sm:$0xff]
        %v234 = vld [vmem:[#allocation2 + $0x38] sm:$0xff]
        %v235 = vld [vmem:[#allocation2 + $0x40] sm:$0xff]
        %v236 = vld [vmem:[#allocation2 + $0x48] sm:$0xff]
        %v237 = vld [vmem:[#allocation2 + $0x50] sm:$0xff]
        %v238 = vld [vmem:[#allocation2 + $0x58] sm:$0xff]
        %v239 = vld [vmem:[#allocation2 + $0x60] sm:$0xff]
        %v240 = vld [vmem:[#allocation2 + $0x68] sm:$0xff]
        %v241 = vld [vmem:[#allocation2 + $0x70] sm:$0xff]
        %v242 = vld [vmem:[#allocation2 + $0x78] sm:$0xff]
        %v243 = vld [vmem:[#allocation2 + $0x80] sm:$0xff]
        %v244 = vld [vmem:[#allocation2 + $0x88] sm:$0xff]
        %v245 = vld [vmem:[#allocation2 + $0x90] sm:$0xff]
        %v246 = vld [vmem:[#allocation2 + $0x98] sm:$0xff]
        %v247 = vld [vmem:[#allocation2 + $0xa0] sm:$0xff]
        %v248 = vld [vmem:[#allocation2 + $0xa8] sm:$0xff]
        %v249 = vld [vmem:[#allocation2 + $0xb0] sm:$0xff]
        %v250 = vld [vmem:[#allocation2 + $0xb8] sm:$0xff]
        %v251 = vld [vmem:[#allocation2 + $0xc0] sm:$0xff]
        %v252 = vld [vmem:[#allocation2 + $0xc8] sm:$0xff]
        %v253 = vld [vmem:[#allocation2 + $0xd0] sm:$0xff]
        %v254 = vld [vmem:[#allocation2 + $0xd8] sm:$0xff]
        %v255 = vld [vmem:[#allocation2 + $0xe0] sm:$0xff]
        %v256 = vld [vmem:[#allocation2 + $0xe8] sm:$0xff]
        %v257 = vld [vmem:[#allocation2 + $0xf0] sm:$0xff]
        %v258 = vld [vmem:[#allocation2 + $0xf8] sm:$0xff]
        %v259 = vld [vmem:[%s223] sm:$0x3]
        %v260 = vld [vmem:[%s3] sm:$0xff]
        %v261 = vld [vmem:[%s3 + $0x8] sm:$0xff]
        %v262 = vld [vmem:[%s3 + $0x10] sm:$0xff]
        %v263 = vld [vmem:[%s3 + $0x18] sm:$0xff]
        %v264 = vld [vmem:[#allocation5] sm:$0xf]
        %v265 = vld [vmem:[#allocation5 + $0x4] sm:$0xf]
        %v266 = vld [vmem:[#allocation5 + $0x8] sm:$0xf]
        %v267 = vld [vmem:[#allocation5 + $0xc] sm:$0xf]
        %v268 = vunpack.c.l.bf16 %v264
        %v269 = vunpack.c.l.bf16 %v265
        %v270 = vunpack.c.l.bf16 %v266
        %v271 = vunpack.c.l.bf16 %v267
        %273 = vset.pattern.permute.xlu0 0
        %274 = vperm.xlu0 %273, %v268
        %v275 = vpop.permute.xlu0 %274
        %278 = vset.pattern.permute.xlu0 0
        %279 = vperm.xlu0 %278, %v269
        %v280 = vpop.permute.xlu0 %279
        %283 = vset.pattern.permute.xlu0 0
        %284 = vperm.xlu0 %283, %v270
        %v285 = vpop.permute.xlu0 %284
        %288 = vset.pattern.permute.xlu0 0
        %289 = vperm.xlu0 %288, %v271
        %v290 = vpop.permute.xlu0 %289
        %v293 = vlaneseq
        %v294 = vshrl.u32 %v293, 7
        %v295 = vsub.s32 0, %v294
        %v296 = vrot.slane %v259, %v295
        %v297 = vlaneseq
        %v298 = vshrl.u32 %v297, 7
        %v299 = vsub.s32 1, %v298
        %v300 = vrot.slane %v259, %v299
        %v303 = vmul.f32 %v275, %v296
        %v304 = vmul.f32 %v275, %v300
        %v305 = vmul.f32 %v280, %v296
        %v306 = vmul.f32 %v280, %v300
        %v307 = vmul.f32 %v285, %v296
        %v308 = vmul.f32 %v285, %v300
        %v309 = vmul.f32 %v290, %v296
        %v310 = vmul.f32 %v290, %v300
        %v311 = vpack.c.bf16 %v305, %v303
        %v312 = vpack.c.bf16 %v306, %v304
        %v313 = vpack.c.bf16 %v309, %v307
        %v314 = vpack.c.bf16 %v310, %v308
        %316 = vset.pattern.permute.xlu0 0
        %317 = vperm.xlu0 %316, %v260
        %v318 = vpop.permute.xlu0 %317
        %321 = vset.pattern.permute.xlu0 0
        %322 = vperm.xlu0 %321, %v261
        %v323 = vpop.permute.xlu0 %322
        %326 = vset.pattern.permute.xlu0 0
        %327 = vperm.xlu0 %326, %v262
        %v328 = vpop.permute.xlu0 %327
        %331 = vset.pattern.permute.xlu0 0
        %332 = vperm.xlu0 %331, %v263
        %v333 = vpop.permute.xlu0 %332
        %v367 = vunpack.c.l.b16 %v227
        %v368 = vunpack.c.h.b16 %v227
        %v369 = vunpack.c.l.b16 %v228
        %v370 = vunpack.c.h.b16 %v228
        %v371 = vunpack.c.l.b16 %v229
        %v372 = vunpack.c.h.b16 %v229
        %v373 = vunpack.c.l.b16 %v230
        %v374 = vunpack.c.h.b16 %v230
        %v375 = vunpack.c.l.b16 %v231
        %v376 = vunpack.c.h.b16 %v231
        %v377 = vunpack.c.l.b16 %v232
        %v378 = vunpack.c.h.b16 %v232
        %v379 = vunpack.c.l.b16 %v233
        %v380 = vunpack.c.h.b16 %v233
        %v381 = vunpack.c.l.b16 %v234
        %v382 = vunpack.c.h.b16 %v234
        %v383 = vunpack.c.l.b16 %v235
        %v384 = vunpack.c.h.b16 %v235
        %v385 = vunpack.c.l.b16 %v236
        %v386 = vunpack.c.h.b16 %v236
        %v387 = vunpack.c.l.b16 %v237
        %v388 = vunpack.c.h.b16 %v237
        %v389 = vunpack.c.l.b16 %v238
        %v390 = vunpack.c.h.b16 %v238
        %v391 = vunpack.c.l.b16 %v239
        %v392 = vunpack.c.h.b16 %v239
        %v393 = vunpack.c.l.b16 %v240
        %v394 = vunpack.c.h.b16 %v240
        %v395 = vunpack.c.l.b16 %v241
        %v396 = vunpack.c.h.b16 %v241
        %v397 = vunpack.c.l.b16 %v242
        %v398 = vunpack.c.h.b16 %v242
        %v399 = vunpack.c.l.b16 %v243
        %v400 = vunpack.c.h.b16 %v243
        %v401 = vunpack.c.l.b16 %v244
        %v402 = vunpack.c.h.b16 %v244
        %v403 = vunpack.c.l.b16 %v245
        %v404 = vunpack.c.h.b16 %v245
        %v405 = vunpack.c.l.b16 %v246
        %v406 = vunpack.c.h.b16 %v246
        %v407 = vunpack.c.l.b16 %v247
        %v408 = vunpack.c.h.b16 %v247
        %v409 = vunpack.c.l.b16 %v248
        %v410 = vunpack.c.h.b16 %v248
        %v411 = vunpack.c.l.b16 %v249
        %v412 = vunpack.c.h.b16 %v249
        %v413 = vunpack.c.l.b16 %v250
        %v414 = vunpack.c.h.b16 %v250
        %v415 = vunpack.c.l.b16 %v251
        %v416 = vunpack.c.h.b16 %v251
        %v417 = vunpack.c.l.b16 %v252
        %v418 = vunpack.c.h.b16 %v252
        %v419 = vunpack.c.l.b16 %v253
        %v420 = vunpack.c.h.b16 %v253
        %v421 = vunpack.c.l.b16 %v254
        %v422 = vunpack.c.h.b16 %v254
        %v423 = vunpack.c.l.b16 %v255
        %v424 = vunpack.c.h.b16 %v255
        %v425 = vunpack.c.l.b16 %v256
        %v426 = vunpack.c.h.b16 %v256
        %v427 = vunpack.c.l.b16 %v257
        %v428 = vunpack.c.h.b16 %v257
        %v429 = vunpack.c.l.b16 %v258
        %v430 = vunpack.c.h.b16 %v258
        %v431 = vpack.c.b16 %v369, %v367
        %v432 = vpack.c.b16 %v370, %v368
        %v433 = vpack.c.b16 %v373, %v371
        %v434 = vpack.c.b16 %v374, %v372
        %v435 = vpack.c.b16 %v377, %v375
        %v436 = vpack.c.b16 %v378, %v376
        %v437 = vpack.c.b16 %v381, %v379
        %v438 = vpack.c.b16 %v382, %v380
        %v439 = vpack.c.b16 %v385, %v383
        %v440 = vpack.c.b16 %v386, %v384
        %v441 = vpack.c.b16 %v389, %v387
        %v442 = vpack.c.b16 %v390, %v388
        %v443 = vpack.c.b16 %v393, %v391
        %v444 = vpack.c.b16 %v394, %v392
        %v445 = vpack.c.b16 %v397, %v395
        %v446 = vpack.c.b16 %v398, %v396
        %v447 = vpack.c.b16 %v401, %v399
        %v448 = vpack.c.b16 %v402, %v400
        %v449 = vpack.c.b16 %v405, %v403
        %v450 = vpack.c.b16 %v406, %v404
        %v451 = vpack.c.b16 %v409, %v407
        %v452 = vpack.c.b16 %v410, %v408
        %v453 = vpack.c.b16 %v413, %v411
        %v454 = vpack.c.b16 %v414, %v412
        %v455 = vpack.c.b16 %v417, %v415
        %v456 = vpack.c.b16 %v418, %v416
        %v457 = vpack.c.b16 %v421, %v419
        %v458 = vpack.c.b16 %v422, %v420
        %v459 = vpack.c.b16 %v425, %v423
        %v460 = vpack.c.b16 %v426, %v424
        %v461 = vpack.c.b16 %v429, %v427
        %v462 = vpack.c.b16 %v430, %v428
        %495 = vmatprep.subr.bf16.mxu0 %v446
        %496 = vmatpush1.bf16.msra.mxu0 %v445
        %497 = vmatprep.subr.bf16.mxu0 %v444
        %498 = vmatpush1.bf16.msra.mxu0 %v443
        %499 = vmatprep.subr.bf16.mxu0 %v442
        %500 = vmatpush1.bf16.msra.mxu0 %v441
        %501 = vmatprep.subr.bf16.mxu0 %v440
        %502 = vmatpush1.bf16.msra.mxu0 %v439
        %503 = vmatprep.subr.bf16.mxu0 %v438
        %504 = vmatpush1.bf16.msra.mxu0 %v437
        %505 = vmatprep.subr.bf16.mxu0 %v436
        %506 = vmatpush1.bf16.msra.mxu0 %v435
        %507 = vmatprep.subr.bf16.mxu0 %v434
        %508 = vmatpush1.bf16.msra.mxu0 %v433
        %509 = vmatprep.subr.bf16.mxu0 %v432
        %510 = vmatpush1.bf16.msra.mxu0 %v431
        %511 = vmatprep.subr.bf16.mxu0 %v462
        %512 = vmatpush2.bf16.msra.mxu0 %v461
        %513 = vmatprep.subr.bf16.mxu0 %v460
        %514 = vmatpush2.bf16.msra.mxu0 %v459
        %515 = vmatprep.subr.bf16.mxu0 %v458
        %516 = vmatpush2.bf16.msra.mxu0 %v457
        %517 = vmatprep.subr.bf16.mxu0 %v456
        %518 = vmatpush2.bf16.msra.mxu0 %v455
        %519 = vmatprep.subr.bf16.mxu0 %v454
        %520 = vmatpush2.bf16.msra.mxu0 %v453
        %521 = vmatprep.subr.bf16.mxu0 %v452
        %522 = vmatpush2.bf16.msra.mxu0 %v451
        %523 = vmatprep.subr.bf16.mxu0 %v450
        %524 = vmatpush2.bf16.msra.mxu0 %v449
        %525 = vmatprep.subr.bf16.mxu0 %v448
        %526 = vmatpush2.bf16.msra.mxu0 %v447
        %527 = vmatprep.mubr.bf16.mxu0 %v312
        %528 = vmatmul.mubr.bf16.gmra.mxu0 %v311
        %v529 = vpop.f32.mrf.mxu0
        %v530 = vadd.f32 %v318, %v529
        %v531 = vpop.f32.mrf.mxu0
        %v532 = vadd.f32 %v318, %v531
        %v533 = vpop.f32.mrf.mxu0
        %v534 = vadd.f32 %v323, %v533
        %v535 = vpop.f32.mrf.mxu0
        %v536 = vadd.f32 %v323, %v535
        %537 = vmatprep.mubr.bf16.mxu0 %v314
        %538 = vmatmul.mubr.bf16.gmra.mxu0 %v313
        %v539 = vpop.f32.mrf.mxu0
        %v540 = vadd.f32 %v328, %v539
        %v541 = vpop.f32.mrf.mxu0
        %v542 = vadd.f32 %v328, %v541
        %v543 = vpop.f32.mrf.mxu0
        %v544 = vadd.f32 %v333, %v543
        %v545 = vpop.f32.mrf.mxu0
        %v546 = vadd.f32 %v333, %v545
        %547 = vdwg.mxu0
        %v548 = vmax.f32 %v530, 0.0
        %v549 = vmax.f32 %v532, 0.0
        %v550 = vmax.f32 %v534, 0.0
        %v551 = vmax.f32 %v536, 0.0
        %v552 = vmax.f32 %v540, 0.0
        %v553 = vmax.f32 %v542, 0.0
        %v554 = vmax.f32 %v544, 0.0
        %v555 = vmax.f32 %v546, 0.0
        %v556 = vpack.c.bf16 %v550, %v548
        %v557 = vpack.c.bf16 %v551, %v549
        %v558 = vpack.c.bf16 %v554, %v552
        %v559 = vpack.c.bf16 %v555, %v553
        %s560 = scalar_lea.vmem [#allocation5], 16
        %v561 = vld [vmem:[%s560] sm:$0xf]
        %v562 = vld [vmem:[%s560 + $0x4] sm:$0xf]
        %v563 = vld [vmem:[%s560 + $0x8] sm:$0xf]
        %v564 = vld [vmem:[%s560 + $0xc] sm:$0xf]
        %v569 = vunpack.c.l.b16 %v561
        %v570 = vunpack.c.l.b16 %v562
        %v571 = vunpack.c.l.b16 %v563
        %v572 = vunpack.c.l.b16 %v564
        %v573 = vpack.c.b16 %v570, %v569
        %v574 = vpack.c.b16 %v572, %v571
        %vm575 = vcmask 261120
        %v577 = vsel %vm575, %v573, 0
        %v580 = vsel %vm575, %v574, 0
        %582 = vmatprep.subr.bf16.mxu0 0
        %583 = vmatpush1.bf16.msra.mxu0 0
        %584 = vmatprep.subr.bf16.mxu0 0
        %585 = vmatpush1.bf16.msra.mxu0 0
        %586 = vmatprep.subr.bf16.mxu0 0
        %587 = vmatpush1.bf16.msra.mxu0 0
        %588 = vmatprep.subr.bf16.mxu0 0
        %589 = vmatpush1.bf16.msra.mxu0 0
        %590 = vmatprep.subr.bf16.mxu0 0
        %591 = vmatpush1.bf16.msra.mxu0 0
        %592 = vmatprep.subr.bf16.mxu0 0
        %593 = vmatpush1.bf16.msra.mxu0 0
        %594 = vmatprep.subr.bf16.mxu0 %v559
        %595 = vmatpush1.bf16.msra.mxu0 %v558
        %596 = vmatprep.subr.bf16.mxu0 %v557
        %597 = vmatpush1.bf16.msra.mxu0 %v556
        %598 = vmatprep.subr.bf16.mxu0 0
        %599 = vmatpush2.bf16.msra.mxu0 0
        %600 = vmatprep.subr.bf16.mxu0 0
        %601 = vmatpush2.bf16.msra.mxu0 0
        %602 = vmatprep.subr.bf16.mxu0 0
        %603 = vmatpush2.bf16.msra.mxu0 0
        %604 = vmatprep.subr.bf16.mxu0 0
        %605 = vmatpush2.bf16.msra.mxu0 0
        %606 = vmatprep.subr.bf16.mxu0 0
        %607 = vmatpush2.bf16.msra.mxu0 0
        %608 = vmatprep.subr.bf16.mxu0 0
        %609 = vmatpush2.bf16.msra.mxu0 0
        %610 = vmatprep.subr.bf16.mxu0 0
        %611 = vmatpush2.bf16.msra.mxu0 0
        %612 = vmatprep.subr.bf16.mxu0 0
        %613 = vmatpush2.bf16.msra.mxu0 0
        %614 = vmatprep.mubr.bf16.mxu0 0
        %615 = vmatmul.mubr.bf16.gmra.mxu0 %v577
        %v616 = vpop.f32.mrf.mxu0
        %v617 = vadd.f32 0.0, %v616
        %v618 = vpop.f32.mrf.mxu0
        %v619 = vadd.f32 0.0, %v618
        %v620 = vpop.f32.mrf.mxu0
        %v621 = vadd.f32 0.0, %v620
        %v622 = vpop.f32.mrf.mxu0
        %v623 = vadd.f32 0.0, %v622
        %624 = vmatprep.mubr.bf16.mxu0 0
        %625 = vmatmul.mubr.bf16.gmra.mxu0 %v580
        %v626 = vpop.f32.mrf.mxu0
        %v627 = vadd.f32 0.0, %v626
        %v628 = vpop.f32.mrf.mxu0
        %v629 = vadd.f32 0.0, %v628
        %v630 = vpop.f32.mrf.mxu0
        %v631 = vadd.f32 0.0, %v630
        %v632 = vpop.f32.mrf.mxu0
        %v633 = vadd.f32 0.0, %v632
        %634 = vdwg.mxu0
        %v635 = vpack.c.bf16 %v621, %v617
        %v636 = vpack.c.bf16 %v623, %v619
        %v637 = vpack.c.bf16 %v631, %v627
        %v638 = vpack.c.bf16 %v633, %v629
        %639 = vset.pattern.permute.xlu0 1
        %640 = vperm.xlu0 %639, %v260
        %v641 = vpop.permute.xlu0 %640
        %643 = vset.pattern.permute.xlu0 1
        %644 = vperm.xlu0 %643, %v261
        %v645 = vpop.permute.xlu0 %644
        %647 = vset.pattern.permute.xlu0 1
        %648 = vperm.xlu0 %647, %v262
        %v649 = vpop.permute.xlu0 %648
        %651 = vset.pattern.permute.xlu0 1
        %652 = vperm.xlu0 %651, %v263
        %v653 = vpop.permute.xlu0 %652
        %655 = vmatprep.subr.bf16.mxu0 %v446
        %656 = vmatpush1.bf16.msra.mxu0 %v445
        %657 = vmatprep.subr.bf16.mxu0 %v444
        %658 = vmatpush1.bf16.msra.mxu0 %v443
        %659 = vmatprep.subr.bf16.mxu0 %v442
        %660 = vmatpush1.bf16.msra.mxu0 %v441
        %661 = vmatprep.subr.bf16.mxu0 %v440
        %662 = vmatpush1.bf16.msra.mxu0 %v439
        %663 = vmatprep.subr.bf16.mxu0 %v438
        %664 = vmatpush1.bf16.msra.mxu0 %v437
        %665 = vmatprep.subr.bf16.mxu0 %v436
        %666 = vmatpush1.bf16.msra.mxu0 %v435
        %667 = vmatprep.subr.bf16.mxu0 %v434
        %668 = vmatpush1.bf16.msra.mxu0 %v433
        %669 = vmatprep.subr.bf16.mxu0 %v432
        %670 = vmatpush1.bf16.msra.mxu0 %v431
        %671 = vmatprep.subr.bf16.mxu0 %v462
        %672 = vmatpush2.bf16.msra.mxu0 %v461
        %673 = vmatprep.subr.bf16.mxu0 %v460
        %674 = vmatpush2.bf16.msra.mxu0 %v459
        %675 = vmatprep.subr.bf16.mxu0 %v458
        %676 = vmatpush2.bf16.msra.mxu0 %v457
        %677 = vmatprep.subr.bf16.mxu0 %v456
        %678 = vmatpush2.bf16.msra.mxu0 %v455
        %679 = vmatprep.subr.bf16.mxu0 %v454
        %680 = vmatpush2.bf16.msra.mxu0 %v453
        %681 = vmatprep.subr.bf16.mxu0 %v452
        %682 = vmatpush2.bf16.msra.mxu0 %v451
        %683 = vmatprep.subr.bf16.mxu0 %v450
        %684 = vmatpush2.bf16.msra.mxu0 %v449
        %685 = vmatprep.subr.bf16.mxu0 %v448
        %686 = vmatpush2.bf16.msra.mxu0 %v447
        %687 = vmatprep.mubr.bf16.mxu0 %v636
        %688 = vmatmul.mubr.bf16.gmra.mxu0 %v635
        %v689 = vpop.f32.mrf.mxu0
        %v690 = vadd.f32 %v641, %v689
        %v691 = vpop.f32.mrf.mxu0
        %v692 = vadd.f32 %v641, %v691
        %v693 = vpop.f32.mrf.mxu0
        %v694 = vadd.f32 %v645, %v693
        %v695 = vpop.f32.mrf.mxu0
        %v696 = vadd.f32 %v645, %v695
        %697 = vmatprep.mubr.bf16.mxu0 %v638
        %698 = vmatmul.mubr.bf16.gmra.mxu0 %v637
        %v699 = vpop.f32.mrf.mxu0
        %v700 = vadd.f32 %v649, %v699
        %v701 = vpop.f32.mrf.mxu0
        %v702 = vadd.f32 %v649, %v701
        %v703 = vpop.f32.mrf.mxu0
        %v704 = vadd.f32 %v653, %v703
        %v705 = vpop.f32.mrf.mxu0
        %v706 = vadd.f32 %v653, %v705
        %707 = vdwg.mxu0
        %v708 = vmax.f32 %v690, 0.0
        %v709 = vmax.f32 %v692, 0.0
        %v710 = vmax.f32 %v694, 0.0
        %v711 = vmax.f32 %v696, 0.0
        %v712 = vmax.f32 %v700, 0.0
        %v713 = vmax.f32 %v702, 0.0
        %v714 = vmax.f32 %v704, 0.0
        %v715 = vmax.f32 %v706, 0.0
        %v716 = vpack.c.bf16 %v710, %v708
        %v717 = vpack.c.bf16 %v711, %v709
        %v718 = vpack.c.bf16 %v714, %v712
        %v719 = vpack.c.bf16 %v715, %v713
        %s720 = scalar_lea.vmem [#allocation5], 32
        %v721 = vld [vmem:[%s720] sm:$0xf]
        %v722 = vld [vmem:[%s720 + $0x4] sm:$0xf]
        %v723 = vld [vmem:[%s720 + $0x8] sm:$0xf]
        %v724 = vld [vmem:[%s720 + $0xc] sm:$0xf]
        %v729 = vunpack.c.l.b16 %v721
        %v730 = vunpack.c.l.b16 %v722
        %v731 = vunpack.c.l.b16 %v723
        %v732 = vunpack.c.l.b16 %v724
        %v733 = vpack.c.b16 %v730, %v729
        %v734 = vpack.c.b16 %v732, %v731
        %v736 = vsel %vm575, %v733, 0
        %v739 = vsel %vm575, %v734, 0
        %741 = vmatprep.subr.bf16.mxu0 0
        %742 = vmatpush1.bf16.msra.mxu0 0
        %743 = vmatprep.subr.bf16.mxu0 0
        %744 = vmatpush1.bf16.msra.mxu0 0
        %745 = vmatprep.subr.bf16.mxu0 0
        %746 = vmatpush1.bf16.msra.mxu0 0
        %747 = vmatprep.subr.bf16.mxu0 0
        %748 = vmatpush1.bf16.msra.mxu0 0
        %749 = vmatprep.subr.bf16.mxu0 0
        %750 = vmatpush1.bf16.msra.mxu0 0
        %751 = vmatprep.subr.bf16.mxu0 0
        %752 = vmatpush1.bf16.msra.mxu0 0
        %753 = vmatprep.subr.bf16.mxu0 %v719
        %754 = vmatpush1.bf16.msra.mxu0 %v718
        %755 = vmatprep.subr.bf16.mxu0 %v717
        %756 = vmatpush1.bf16.msra.mxu0 %v716
        %757 = vmatprep.subr.bf16.mxu0 0
        %758 = vmatpush2.bf16.msra.mxu0 0
        %759 = vmatprep.subr.bf16.mxu0 0
        %760 = vmatpush2.bf16.msra.mxu0 0
        %761 = vmatprep.subr.bf16.mxu0 0
        %762 = vmatpush2.bf16.msra.mxu0 0
        %763 = vmatprep.subr.bf16.mxu0 0
        %764 = vmatpush2.bf16.msra.mxu0 0
        %765 = vmatprep.subr.bf16.mxu0 0
        %766 = vmatpush2.bf16.msra.mxu0 0
        %767 = vmatprep.subr.bf16.mxu0 0
        %768 = vmatpush2.bf16.msra.mxu0 0
        %769 = vmatprep.subr.bf16.mxu0 0
        %770 = vmatpush2.bf16.msra.mxu0 0
        %771 = vmatprep.subr.bf16.mxu0 0
        %772 = vmatpush2.bf16.msra.mxu0 0
        %773 = vmatprep.mubr.bf16.mxu0 0
        %774 = vmatmul.mubr.bf16.gmra.mxu0 %v736
        %v775 = vpop.f32.mrf.mxu0
        %v776 = vadd.f32 0.0, %v775
        %v777 = vpop.f32.mrf.mxu0
        %v778 = vadd.f32 0.0, %v777
        %v779 = vpop.f32.mrf.mxu0
        %v780 = vadd.f32 0.0, %v779
        %v781 = vpop.f32.mrf.mxu0
        %v782 = vadd.f32 0.0, %v781
        %783 = vmatprep.mubr.bf16.mxu0 0
        %784 = vmatmul.mubr.bf16.gmra.mxu0 %v739
        %v785 = vpop.f32.mrf.mxu0
        %v786 = vadd.f32 0.0, %v785
        %v787 = vpop.f32.mrf.mxu0
        %v788 = vadd.f32 0.0, %v787
        %v789 = vpop.f32.mrf.mxu0
        %v790 = vadd.f32 0.0, %v789
        %v791 = vpop.f32.mrf.mxu0
        %v792 = vadd.f32 0.0, %v791
        %793 = vdwg.mxu0
        %v794 = vpack.c.bf16 %v780, %v776
        %v795 = vpack.c.bf16 %v782, %v778
        %v796 = vpack.c.bf16 %v790, %v786
        %v797 = vpack.c.bf16 %v792, %v788
        %798 = vset.pattern.permute.xlu0 2
        %799 = vperm.xlu0 %798, %v260
        %v800 = vpop.permute.xlu0 %799
        %802 = vset.pattern.permute.xlu0 2
        %803 = vperm.xlu0 %802, %v261
        %v804 = vpop.permute.xlu0 %803
        %806 = vset.pattern.permute.xlu0 2
        %807 = vperm.xlu0 %806, %v262
        %v808 = vpop.permute.xlu0 %807
        %810 = vset.pattern.permute.xlu0 2
        %811 = vperm.xlu0 %810, %v263
        %v812 = vpop.permute.xlu0 %811
        %814 = vmatprep.subr.bf16.mxu0 %v446
        %815 = vmatpush1.bf16.msra.mxu0 %v445
        %816 = vmatprep.subr.bf16.mxu0 %v444
        %817 = vmatpush1.bf16.msra.mxu0 %v443
        %818 = vmatprep.subr.bf16.mxu0 %v442
        %819 = vmatpush1.bf16.msra.mxu0 %v441
        %820 = vmatprep.subr.bf16.mxu0 %v440
        %821 = vmatpush1.bf16.msra.mxu0 %v439
        %822 = vmatprep.subr.bf16.mxu0 %v438
        %823 = vmatpush1.bf16.msra.mxu0 %v437
        %824 = vmatprep.subr.bf16.mxu0 %v436
        %825 = vmatpush1.bf16.msra.mxu0 %v435
        %826 = vmatprep.subr.bf16.mxu0 %v434
        %827 = vmatpush1.bf16.msra.mxu0 %v433
        %828 = vmatprep.subr.bf16.mxu0 %v432
        %829 = vmatpush1.bf16.msra.mxu0 %v431
        %830 = vmatprep.subr.bf16.mxu0 %v462
        %831 = vmatpush2.bf16.msra.mxu0 %v461
        %832 = vmatprep.subr.bf16.mxu0 %v460
        %833 = vmatpush2.bf16.msra.mxu0 %v459
        %834 = vmatprep.subr.bf16.mxu0 %v458
        %835 = vmatpush2.bf16.msra.mxu0 %v457
        %836 = vmatprep.subr.bf16.mxu0 %v456
        %837 = vmatpush2.bf16.msra.mxu0 %v455
        %838 = vmatprep.subr.bf16.mxu0 %v454
        %839 = vmatpush2.bf16.msra.mxu0 %v453
        %840 = vmatprep.subr.bf16.mxu0 %v452
        %841 = vmatpush2.bf16.msra.mxu0 %v451
        %842 = vmatprep.subr.bf16.mxu0 %v450
        %843 = vmatpush2.bf16.msra.mxu0 %v449
        %844 = vmatprep.subr.bf16.mxu0 %v448
        %845 = vmatpush2.bf16.msra.mxu0 %v447
        %846 = vmatprep.mubr.bf16.mxu0 %v795
        %847 = vmatmul.mubr.bf16.gmra.mxu0 %v794
        %v848 = vpop.f32.mrf.mxu0
        %v849 = vadd.f32 %v800, %v848
        %v850 = vpop.f32.mrf.mxu0
        %v851 = vadd.f32 %v800, %v850
        %v852 = vpop.f32.mrf.mxu0
        %v853 = vadd.f32 %v804, %v852
        %v854 = vpop.f32.mrf.mxu0
        %v855 = vadd.f32 %v804, %v854
        %856 = vmatprep.mubr.bf16.mxu0 %v797
        %857 = vmatmul.mubr.bf16.gmra.mxu0 %v796
        %v858 = vpop.f32.mrf.mxu0
        %v859 = vadd.f32 %v808, %v858
        %v860 = vpop.f32.mrf.mxu0
        %v861 = vadd.f32 %v808, %v860
        %v862 = vpop.f32.mrf.mxu0
        %v863 = vadd.f32 %v812, %v862
        %v864 = vpop.f32.mrf.mxu0
        %v865 = vadd.f32 %v812, %v864
        %866 = vdwg.mxu0
        %v867 = vmax.f32 %v849, 0.0
        %v868 = vmax.f32 %v851, 0.0
        %v869 = vmax.f32 %v853, 0.0
        %v870 = vmax.f32 %v855, 0.0
        %v871 = vmax.f32 %v859, 0.0
        %v872 = vmax.f32 %v861, 0.0
        %v873 = vmax.f32 %v863, 0.0
        %v874 = vmax.f32 %v865, 0.0
        %v875 = vpack.c.bf16 %v869, %v867
        %v876 = vpack.c.bf16 %v870, %v868
        %v877 = vpack.c.bf16 %v873, %v871
        %v878 = vpack.c.bf16 %v874, %v872
        %s879 = scalar_lea.vmem [#allocation5], 48
        %v880 = vld [vmem:[%s879] sm:$0xf]
        %v881 = vld [vmem:[%s879 + $0x4] sm:$0xf]
        %v882 = vld [vmem:[%s879 + $0x8] sm:$0xf]
        %v883 = vld [vmem:[%s879 + $0xc] sm:$0xf]
        %v888 = vunpack.c.l.b16 %v880
        %v889 = vunpack.c.l.b16 %v881
        %v890 = vunpack.c.l.b16 %v882
        %v891 = vunpack.c.l.b16 %v883
        %v892 = vpack.c.b16 %v889, %v888
        %v893 = vpack.c.b16 %v891, %v890
        %v895 = vsel %vm575, %v892, 0
        %v898 = vsel %vm575, %v893, 0
        %900 = vmatprep.subr.bf16.mxu0 0
        %901 = vmatpush1.bf16.msra.mxu0 0
        %902 = vmatprep.subr.bf16.mxu0 0
        %903 = vmatpush1.bf16.msra.mxu0 0
        %904 = vmatprep.subr.bf16.mxu0 0
        %905 = vmatpush1.bf16.msra.mxu0 0
        %906 = vmatprep.subr.bf16.mxu0 0
        %907 = vmatpush1.bf16.msra.mxu0 0
        %908 = vmatprep.subr.bf16.mxu0 0
        %909 = vmatpush1.bf16.msra.mxu0 0
        %910 = vmatprep.subr.bf16.mxu0 0
        %911 = vmatpush1.bf16.msra.mxu0 0
        %912 = vmatprep.subr.bf16.mxu0 %v878
        %913 = vmatpush1.bf16.msra.mxu0 %v877
        %914 = vmatprep.subr.bf16.mxu0 %v876
        %915 = vmatpush1.bf16.msra.mxu0 %v875
        %916 = vmatprep.subr.bf16.mxu0 0
        %917 = vmatpush2.bf16.msra.mxu0 0
        %918 = vmatprep.subr.bf16.mxu0 0
        %919 = vmatpush2.bf16.msra.mxu0 0
        %920 = vmatprep.subr.bf16.mxu0 0
        %921 = vmatpush2.bf16.msra.mxu0 0
        %922 = vmatprep.subr.bf16.mxu0 0
        %923 = vmatpush2.bf16.msra.mxu0 0
        %924 = vmatprep.subr.bf16.mxu0 0
        %925 = vmatpush2.bf16.msra.mxu0 0
        %926 = vmatprep.subr.bf16.mxu0 0
        %927 = vmatpush2.bf16.msra.mxu0 0
        %928 = vmatprep.subr.bf16.mxu0 0
        %929 = vmatpush2.bf16.msra.mxu0 0
        %930 = vmatprep.subr.bf16.mxu0 0
        %931 = vmatpush2.bf16.msra.mxu0 0
        %932 = vmatprep.mubr.bf16.mxu0 0
        %933 = vmatmul.mubr.bf16.gmra.mxu0 %v895
        %v934 = vpop.f32.mrf.mxu0
        %v935 = vadd.f32 0.0, %v934
        %v936 = vpop.f32.mrf.mxu0
        %v937 = vadd.f32 0.0, %v936
        %v938 = vpop.f32.mrf.mxu0
        %v939 = vadd.f32 0.0, %v938
        %v940 = vpop.f32.mrf.mxu0
        %v941 = vadd.f32 0.0, %v940
        %942 = vmatprep.mubr.bf16.mxu0 0
        %943 = vmatmul.mubr.bf16.gmra.mxu0 %v898
        %v944 = vpop.f32.mrf.mxu0
        %v945 = vadd.f32 0.0, %v944
        %v946 = vpop.f32.mrf.mxu0
        %v947 = vadd.f32 0.0, %v946
        %v948 = vpop.f32.mrf.mxu0
        %v949 = vadd.f32 0.0, %v948
        %v950 = vpop.f32.mrf.mxu0
        %v951 = vadd.f32 0.0, %v950
        %952 = vdwg.mxu0
        %v953 = vpack.c.bf16 %v939, %v935
        %v954 = vpack.c.bf16 %v941, %v937
        %v955 = vpack.c.bf16 %v949, %v945
        %v956 = vpack.c.bf16 %v951, %v947
        %957 = vset.pattern.permute.xlu0 3
        %958 = vperm.xlu0 %957, %v260
        %v959 = vpop.permute.xlu0 %958
        %961 = vset.pattern.permute.xlu0 3
        %962 = vperm.xlu0 %961, %v261
        %v963 = vpop.permute.xlu0 %962
        %965 = vset.pattern.permute.xlu0 3
        %966 = vperm.xlu0 %965, %v262
        %v967 = vpop.permute.xlu0 %966
        %969 = vset.pattern.permute.xlu0 3
        %970 = vperm.xlu0 %969, %v263
        %v971 = vpop.permute.xlu0 %970
        %973 = vmatprep.subr.bf16.mxu0 %v446
        %974 = vmatpush1.bf16.msra.mxu0 %v445
        %975 = vmatprep.subr.bf16.mxu0 %v444
        %976 = vmatpush1.bf16.msra.mxu0 %v443
        %977 = vmatprep.subr.bf16.mxu0 %v442
        %978 = vmatpush1.bf16.msra.mxu0 %v441
        %979 = vmatprep.subr.bf16.mxu0 %v440
        %980 = vmatpush1.bf16.msra.mxu0 %v439
        %981 = vmatprep.subr.bf16.mxu0 %v438
        %982 = vmatpush1.bf16.msra.mxu0 %v437
        %983 = vmatprep.subr.bf16.mxu0 %v436
        %984 = vmatpush1.bf16.msra.mxu0 %v435
        %985 = vmatprep.subr.bf16.mxu0 %v434
        %986 = vmatpush1.bf16.msra.mxu0 %v433
        %987 = vmatprep.subr.bf16.mxu0 %v432
        %988 = vmatpush1.bf16.msra.mxu0 %v431
        %989 = vmatprep.subr.bf16.mxu0 %v462
        %990 = vmatpush2.bf16.msra.mxu0 %v461
        %991 = vmatprep.subr.bf16.mxu0 %v460
        %992 = vmatpush2.bf16.msra.mxu0 %v459
        %993 = vmatprep.subr.bf16.mxu0 %v458
        %994 = vmatpush2.bf16.msra.mxu0 %v457
        %995 = vmatprep.subr.bf16.mxu0 %v456
        %996 = vmatpush2.bf16.msra.mxu0 %v455
        %997 = vmatprep.subr.bf16.mxu0 %v454
        %998 = vmatpush2.bf16.msra.mxu0 %v453
        %999 = vmatprep.subr.bf16.mxu0 %v452
        %1000 = vmatpush2.bf16.msra.mxu0 %v451
        %1001 = vmatprep.subr.bf16.mxu0 %v450
        %1002 = vmatpush2.bf16.msra.mxu0 %v449
        %1003 = vmatprep.subr.bf16.mxu0 %v448
        %1004 = vmatpush2.bf16.msra.mxu0 %v447
        %1005 = vmatprep.mubr.bf16.mxu0 %v954
        %1006 = vmatmul.mubr.bf16.gmra.mxu0 %v953
        %v1007 = vpop.f32.mrf.mxu0
        %v1008 = vadd.f32 %v959, %v1007
        %v1009 = vpop.f32.mrf.mxu0
        %v1010 = vadd.f32 %v959, %v1009
        %v1011 = vpop.f32.mrf.mxu0
        %v1012 = vadd.f32 %v963, %v1011
        %v1013 = vpop.f32.mrf.mxu0
        %v1014 = vadd.f32 %v963, %v1013
        %1015 = vmatprep.mubr.bf16.mxu0 %v956
        %1016 = vmatmul.mubr.bf16.gmra.mxu0 %v955
        %v1017 = vpop.f32.mrf.mxu0
        %v1018 = vadd.f32 %v967, %v1017
        %v1019 = vpop.f32.mrf.mxu0
        %v1020 = vadd.f32 %v967, %v1019
        %v1021 = vpop.f32.mrf.mxu0
        %v1022 = vadd.f32 %v971, %v1021
        %v1023 = vpop.f32.mrf.mxu0
        %v1024 = vadd.f32 %v971, %v1023
        %1025 = vdwg.mxu0
        %v1026 = vmax.f32 %v1008, 0.0
        %v1027 = vmax.f32 %v1010, 0.0
        %v1028 = vmax.f32 %v1012, 0.0
        %v1029 = vmax.f32 %v1014, 0.0
        %v1030 = vmax.f32 %v1018, 0.0
        %v1031 = vmax.f32 %v1020, 0.0
        %v1032 = vmax.f32 %v1022, 0.0
        %v1033 = vmax.f32 %v1024, 0.0
        %v1034 = vpack.c.bf16 %v1028, %v1026
        %v1035 = vpack.c.bf16 %v1029, %v1027
        %v1036 = vpack.c.bf16 %v1032, %v1030
        %v1037 = vpack.c.bf16 %v1033, %v1031
        %s1038 = scalar_lea.vmem [#allocation5], 64
        %v1039 = vld [vmem:[%s1038] sm:$0xf]
        %v1040 = vld [vmem:[%s1038 + $0x4] sm:$0xf]
        %v1041 = vld [vmem:[%s1038 + $0x8] sm:$0xf]
        %v1042 = vld [vmem:[%s1038 + $0xc] sm:$0xf]
        %v1047 = vunpack.c.l.b16 %v1039
        %v1048 = vunpack.c.l.b16 %v1040
        %v1049 = vunpack.c.l.b16 %v1041
        %v1050 = vunpack.c.l.b16 %v1042
        %v1051 = vpack.c.b16 %v1048, %v1047
        %v1052 = vpack.c.b16 %v1050, %v1049
        %v1054 = vsel %vm575, %v1051, 0
        %v1057 = vsel %vm575, %v1052, 0
        %1059 = vmatprep.subr.bf16.mxu0 0
        %1060 = vmatpush1.bf16.msra.mxu0 0
        %1061 = vmatprep.subr.bf16.mxu0 0
        %1062 = vmatpush1.bf16.msra.mxu0 0
        %1063 = vmatprep.subr.bf16.mxu0 0
        %1064 = vmatpush1.bf16.msra.mxu0 0
        %1065 = vmatprep.subr.bf16.mxu0 0
        %1066 = vmatpush1.bf16.msra.mxu0 0
        %1067 = vmatprep.subr.bf16.mxu0 0
        %1068 = vmatpush1.bf16.msra.mxu0 0
        %1069 = vmatprep.subr.bf16.mxu0 0
        %1070 = vmatpush1.bf16.msra.mxu0 0
        %1071 = vmatprep.subr.bf16.mxu0 %v1037
        %1072 = vmatpush1.bf16.msra.mxu0 %v1036
        %1073 = vmatprep.subr.bf16.mxu0 %v1035
        %1074 = vmatpush1.bf16.msra.mxu0 %v1034
        %1075 = vmatprep.subr.bf16.mxu0 0
        %1076 = vmatpush2.bf16.msra.mxu0 0
        %1077 = vmatprep.subr.bf16.mxu0 0
        %1078 = vmatpush2.bf16.msra.mxu0 0
        %1079 = vmatprep.subr.bf16.mxu0 0
        %1080 = vmatpush2.bf16.msra.mxu0 0
        %1081 = vmatprep.subr.bf16.mxu0 0
        %1082 = vmatpush2.bf16.msra.mxu0 0
        %1083 = vmatprep.subr.bf16.mxu0 0
        %1084 = vmatpush2.bf16.msra.mxu0 0
        %1085 = vmatprep.subr.bf16.mxu0 0
        %1086 = vmatpush2.bf16.msra.mxu0 0
        %1087 = vmatprep.subr.bf16.mxu0 0
        %1088 = vmatpush2.bf16.msra.mxu0 0
        %1089 = vmatprep.subr.bf16.mxu0 0
        %1090 = vmatpush2.bf16.msra.mxu0 0
        %1091 = vmatprep.mubr.bf16.mxu0 0
        %1092 = vmatmul.mubr.bf16.gmra.mxu0 %v1054
        %v1093 = vpop.f32.mrf.mxu0
        %v1094 = vadd.f32 0.0, %v1093
        %v1095 = vpop.f32.mrf.mxu0
        %v1096 = vadd.f32 0.0, %v1095
        %v1097 = vpop.f32.mrf.mxu0
        %v1098 = vadd.f32 0.0, %v1097
        %v1099 = vpop.f32.mrf.mxu0
        %v1100 = vadd.f32 0.0, %v1099
        %1101 = vmatprep.mubr.bf16.mxu0 0
        %1102 = vmatmul.mubr.bf16.gmra.mxu0 %v1057
        %v1103 = vpop.f32.mrf.mxu0
        %v1104 = vadd.f32 0.0, %v1103
        %v1105 = vpop.f32.mrf.mxu0
        %v1106 = vadd.f32 0.0, %v1105
        %v1107 = vpop.f32.mrf.mxu0
        %v1108 = vadd.f32 0.0, %v1107
        %v1109 = vpop.f32.mrf.mxu0
        %v1110 = vadd.f32 0.0, %v1109
        %1111 = vdwg.mxu0
        %v1112 = vpack.c.bf16 %v1098, %v1094
        %v1113 = vpack.c.bf16 %v1100, %v1096
        %v1114 = vpack.c.bf16 %v1108, %v1104
        %v1115 = vpack.c.bf16 %v1110, %v1106
        %1116 = vset.pattern.permute.xlu0 4
        %1117 = vperm.xlu0 %1116, %v260
        %v1118 = vpop.permute.xlu0 %1117
        %1120 = vset.pattern.permute.xlu0 4
        %1121 = vperm.xlu0 %1120, %v261
        %v1122 = vpop.permute.xlu0 %1121
        %1124 = vset.pattern.permute.xlu0 4
        %1125 = vperm.xlu0 %1124, %v262
        %v1126 = vpop.permute.xlu0 %1125
        %1128 = vset.pattern.permute.xlu0 4
        %1129 = vperm.xlu0 %1128, %v263
        %v1130 = vpop.permute.xlu0 %1129
        %1132 = vmatprep.subr.bf16.mxu0 %v446
        %1133 = vmatpush1.bf16.msra.mxu0 %v445
        %1134 = vmatprep.subr.bf16.mxu0 %v444
        %1135 = vmatpush1.bf16.msra.mxu0 %v443
        %1136 = vmatprep.subr.bf16.mxu0 %v442
        %1137 = vmatpush1.bf16.msra.mxu0 %v441
        %1138 = vmatprep.subr.bf16.mxu0 %v440
        %1139 = vmatpush1.bf16.msra.mxu0 %v439
        %1140 = vmatprep.subr.bf16.mxu0 %v438
        %1141 = vmatpush1.bf16.msra.mxu0 %v437
        %1142 = vmatprep.subr.bf16.mxu0 %v436
        %1143 = vmatpush1.bf16.msra.mxu0 %v435
        %1144 = vmatprep.subr.bf16.mxu0 %v434
        %1145 = vmatpush1.bf16.msra.mxu0 %v433
        %1146 = vmatprep.subr.bf16.mxu0 %v432
        %1147 = vmatpush1.bf16.msra.mxu0 %v431
        %1148 = vmatprep.subr.bf16.mxu0 %v462
        %1149 = vmatpush2.bf16.msra.mxu0 %v461
        %1150 = vmatprep.subr.bf16.mxu0 %v460
        %1151 = vmatpush2.bf16.msra.mxu0 %v459
        %1152 = vmatprep.subr.bf16.mxu0 %v458
        %1153 = vmatpush2.bf16.msra.mxu0 %v457
        %1154 = vmatprep.subr.bf16.mxu0 %v456
        %1155 = vmatpush2.bf16.msra.mxu0 %v455
        %1156 = vmatprep.subr.bf16.mxu0 %v454
        %1157 = vmatpush2.bf16.msra.mxu0 %v453
        %1158 = vmatprep.subr.bf16.mxu0 %v452
        %1159 = vmatpush2.bf16.msra.mxu0 %v451
        %1160 = vmatprep.subr.bf16.mxu0 %v450
        %1161 = vmatpush2.bf16.msra.mxu0 %v449
        %1162 = vmatprep.subr.bf16.mxu0 %v448
        %1163 = vmatpush2.bf16.msra.mxu0 %v447
        %1164 = vmatprep.mubr.bf16.mxu0 %v1113
        %1165 = vmatmul.mubr.bf16.gmra.mxu0 %v1112
        %v1166 = vpop.f32.mrf.mxu0
        %v1167 = vadd.f32 %v1118, %v1166
        %v1168 = vpop.f32.mrf.mxu0
        %v1169 = vadd.f32 %v1118, %v1168
        %v1170 = vpop.f32.mrf.mxu0
        %v1171 = vadd.f32 %v1122, %v1170
        %v1172 = vpop.f32.mrf.mxu0
        %v1173 = vadd.f32 %v1122, %v1172
        %1174 = vmatprep.mubr.bf16.mxu0 %v1115
        %1175 = vmatmul.mubr.bf16.gmra.mxu0 %v1114
        %v1176 = vpop.f32.mrf.mxu0
        %v1177 = vadd.f32 %v1126, %v1176
        %v1178 = vpop.f32.mrf.mxu0
        %v1179 = vadd.f32 %v1126, %v1178
        %v1180 = vpop.f32.mrf.mxu0
        %v1181 = vadd.f32 %v1130, %v1180
        %v1182 = vpop.f32.mrf.mxu0
        %v1183 = vadd.f32 %v1130, %v1182
        %1184 = vdwg.mxu0
        %v1185 = vmax.f32 %v1167, 0.0
        %v1186 = vmax.f32 %v1169, 0.0
        %v1187 = vmax.f32 %v1171, 0.0
        %v1188 = vmax.f32 %v1173, 0.0
        %v1189 = vmax.f32 %v1177, 0.0
        %v1190 = vmax.f32 %v1179, 0.0
        %v1191 = vmax.f32 %v1181, 0.0
        %v1192 = vmax.f32 %v1183, 0.0
        %v1193 = vpack.c.bf16 %v1187, %v1185
        %v1194 = vpack.c.bf16 %v1188, %v1186
        %v1195 = vpack.c.bf16 %v1191, %v1189
        %v1196 = vpack.c.bf16 %v1192, %v1190
        %s1197 = scalar_lea.vmem [#allocation5], 80
        %v1198 = vld [vmem:[%s1197] sm:$0xf]
        %v1199 = vld [vmem:[%s1197 + $0x4] sm:$0xf]
        %v1200 = vld [vmem:[%s1197 + $0x8] sm:$0xf]
        %v1201 = vld [vmem:[%s1197 + $0xc] sm:$0xf]
        %v1206 = vunpack.c.l.b16 %v1198
        %v1207 = vunpack.c.l.b16 %v1199
        %v1208 = vunpack.c.l.b16 %v1200
        %v1209 = vunpack.c.l.b16 %v1201
        %v1210 = vpack.c.b16 %v1207, %v1206
        %v1211 = vpack.c.b16 %v1209, %v1208
        %v1213 = vsel %vm575, %v1210, 0
        %v1216 = vsel %vm575, %v1211, 0
        %1218 = vmatprep.subr.bf16.mxu0 0
        %1219 = vmatpush1.bf16.msra.mxu0 0
        %1220 = vmatprep.subr.bf16.mxu0 0
        %1221 = vmatpush1.bf16.msra.mxu0 0
        %1222 = vmatprep.subr.bf16.mxu0 0
        %1223 = vmatpush1.bf16.msra.mxu0 0
        %1224 = vmatprep.subr.bf16.mxu0 0
        %1225 = vmatpush1.bf16.msra.mxu0 0
        %1226 = vmatprep.subr.bf16.mxu0 0
        %1227 = vmatpush1.bf16.msra.mxu0 0
        %1228 = vmatprep.subr.bf16.mxu0 0
        %1229 = vmatpush1.bf16.msra.mxu0 0
        %1230 = vmatprep.subr.bf16.mxu0 %v1196
        %1231 = vmatpush1.bf16.msra.mxu0 %v1195
        %1232 = vmatprep.subr.bf16.mxu0 %v1194
        %1233 = vmatpush1.bf16.msra.mxu0 %v1193
        %1234 = vmatprep.subr.bf16.mxu0 0
        %1235 = vmatpush2.bf16.msra.mxu0 0
        %1236 = vmatprep.subr.bf16.mxu0 0
        %1237 = vmatpush2.bf16.msra.mxu0 0
        %1238 = vmatprep.subr.bf16.mxu0 0
        %1239 = vmatpush2.bf16.msra.mxu0 0
        %1240 = vmatprep.subr.bf16.mxu0 0
        %1241 = vmatpush2.bf16.msra.mxu0 0
        %1242 = vmatprep.subr.bf16.mxu0 0
        %1243 = vmatpush2.bf16.msra.mxu0 0
        %1244 = vmatprep.subr.bf16.mxu0 0
        %1245 = vmatpush2.bf16.msra.mxu0 0
        %1246 = vmatprep.subr.bf16.mxu0 0
        %1247 = vmatpush2.bf16.msra.mxu0 0
        %1248 = vmatprep.subr.bf16.mxu0 0
        %1249 = vmatpush2.bf16.msra.mxu0 0
        %1250 = vmatprep.mubr.bf16.mxu0 0
        %1251 = vmatmul.mubr.bf16.gmra.mxu0 %v1213
        %v1252 = vpop.f32.mrf.mxu0
        %v1253 = vadd.f32 0.0, %v1252
        %v1254 = vpop.f32.mrf.mxu0
        %v1255 = vadd.f32 0.0, %v1254
        %v1256 = vpop.f32.mrf.mxu0
        %v1257 = vadd.f32 0.0, %v1256
        %v1258 = vpop.f32.mrf.mxu0
        %v1259 = vadd.f32 0.0, %v1258
        %1260 = vmatprep.mubr.bf16.mxu0 0
        %1261 = vmatmul.mubr.bf16.gmra.mxu0 %v1216
        %v1262 = vpop.f32.mrf.mxu0
        %v1263 = vadd.f32 0.0, %v1262
        %v1264 = vpop.f32.mrf.mxu0
        %v1265 = vadd.f32 0.0, %v1264
        %v1266 = vpop.f32.mrf.mxu0
        %v1267 = vadd.f32 0.0, %v1266
        %v1268 = vpop.f32.mrf.mxu0
        %v1269 = vadd.f32 0.0, %v1268
        %1270 = vdwg.mxu0
        %v1271 = vpack.c.bf16 %v1257, %v1253
        %v1272 = vpack.c.bf16 %v1259, %v1255
        %v1273 = vpack.c.bf16 %v1267, %v1263
        %v1274 = vpack.c.bf16 %v1269, %v1265
        %1275 = vset.pattern.permute.xlu0 5
        %1276 = vperm.xlu0 %1275, %v260
        %v1277 = vpop.permute.xlu0 %1276
        %1279 = vset.pattern.permute.xlu0 5
        %1280 = vperm.xlu0 %1279, %v261
        %v1281 = vpop.permute.xlu0 %1280
        %1283 = vset.pattern.permute.xlu0 5
        %1284 = vperm.xlu0 %1283, %v262
        %v1285 = vpop.permute.xlu0 %1284
        %1287 = vset.pattern.permute.xlu0 5
        %1288 = vperm.xlu0 %1287, %v263
        %v1289 = vpop.permute.xlu0 %1288
        %1291 = vmatprep.subr.bf16.mxu0 %v446
        %1292 = vmatpush1.bf16.msra.mxu0 %v445
        %1293 = vmatprep.subr.bf16.mxu0 %v444
        %1294 = vmatpush1.bf16.msra.mxu0 %v443
        %1295 = vmatprep.subr.bf16.mxu0 %v442
        %1296 = vmatpush1.bf16.msra.mxu0 %v441
        %1297 = vmatprep.subr.bf16.mxu0 %v440
        %1298 = vmatpush1.bf16.msra.mxu0 %v439
        %1299 = vmatprep.subr.bf16.mxu0 %v438
        %1300 = vmatpush1.bf16.msra.mxu0 %v437
        %1301 = vmatprep.subr.bf16.mxu0 %v436
        %1302 = vmatpush1.bf16.msra.mxu0 %v435
        %1303 = vmatprep.subr.bf16.mxu0 %v434
        %1304 = vmatpush1.bf16.msra.mxu0 %v433
        %1305 = vmatprep.subr.bf16.mxu0 %v432
        %1306 = vmatpush1.bf16.msra.mxu0 %v431
        %1307 = vmatprep.subr.bf16.mxu0 %v462
        %1308 = vmatpush2.bf16.msra.mxu0 %v461
        %1309 = vmatprep.subr.bf16.mxu0 %v460
        %1310 = vmatpush2.bf16.msra.mxu0 %v459
        %1311 = vmatprep.subr.bf16.mxu0 %v458
        %1312 = vmatpush2.bf16.msra.mxu0 %v457
        %1313 = vmatprep.subr.bf16.mxu0 %v456
        %1314 = vmatpush2.bf16.msra.mxu0 %v455
        %1315 = vmatprep.subr.bf16.mxu0 %v454
        %1316 = vmatpush2.bf16.msra.mxu0 %v453
        %1317 = vmatprep.subr.bf16.mxu0 %v452
        %1318 = vmatpush2.bf16.msra.mxu0 %v451
        %1319 = vmatprep.subr.bf16.mxu0 %v450
        %1320 = vmatpush2.bf16.msra.mxu0 %v449
        %1321 = vmatprep.subr.bf16.mxu0 %v448
        %1322 = vmatpush2.bf16.msra.mxu0 %v447
        %1323 = vmatprep.mubr.bf16.mxu0 %v1272
        %1324 = vmatmul.mubr.bf16.gmra.mxu0 %v1271
        %v1325 = vpop.f32.mrf.mxu0
        %v1326 = vadd.f32 %v1277, %v1325
        %v1327 = vpop.f32.mrf.mxu0
        %v1328 = vadd.f32 %v1277, %v1327
        %v1329 = vpop.f32.mrf.mxu0
        %v1330 = vadd.f32 %v1281, %v1329
        %v1331 = vpop.f32.mrf.mxu0
        %v1332 = vadd.f32 %v1281, %v1331
        %1333 = vmatprep.mubr.bf16.mxu0 %v1274
        %1334 = vmatmul.mubr.bf16.gmra.mxu0 %v1273
        %v1335 = vpop.f32.mrf.mxu0
        %v1336 = vadd.f32 %v1285, %v1335
        %v1337 = vpop.f32.mrf.mxu0
        %v1338 = vadd.f32 %v1285, %v1337
        %v1339 = vpop.f32.mrf.mxu0
        %v1340 = vadd.f32 %v1289, %v1339
        %v1341 = vpop.f32.mrf.mxu0
        %v1342 = vadd.f32 %v1289, %v1341
        %1343 = vdwg.mxu0
        %v1344 = vmax.f32 %v1326, 0.0
        %v1345 = vmax.f32 %v1328, 0.0
        %v1346 = vmax.f32 %v1330, 0.0
        %v1347 = vmax.f32 %v1332, 0.0
        %v1348 = vmax.f32 %v1336, 0.0
        %v1349 = vmax.f32 %v1338, 0.0
        %v1350 = vmax.f32 %v1340, 0.0
        %v1351 = vmax.f32 %v1342, 0.0
        %v1352 = vpack.c.bf16 %v1346, %v1344
        %v1353 = vpack.c.bf16 %v1347, %v1345
        %v1354 = vpack.c.bf16 %v1350, %v1348
        %v1355 = vpack.c.bf16 %v1351, %v1349
        %s1356 = scalar_lea.vmem [#allocation5], 96
        %v1357 = vld [vmem:[%s1356] sm:$0xf]
        %v1358 = vld [vmem:[%s1356 + $0x4] sm:$0xf]
        %v1359 = vld [vmem:[%s1356 + $0x8] sm:$0xf]
        %v1360 = vld [vmem:[%s1356 + $0xc] sm:$0xf]
        %v1365 = vunpack.c.l.b16 %v1357
        %v1366 = vunpack.c.l.b16 %v1358
        %v1367 = vunpack.c.l.b16 %v1359
        %v1368 = vunpack.c.l.b16 %v1360
        %v1369 = vpack.c.b16 %v1366, %v1365
        %v1370 = vpack.c.b16 %v1368, %v1367
        %v1372 = vsel %vm575, %v1369, 0
        %v1375 = vsel %vm575, %v1370, 0
        %1377 = vmatprep.subr.bf16.mxu0 0
        %1378 = vmatpush1.bf16.msra.mxu0 0
        %1379 = vmatprep.subr.bf16.mxu0 0
        %1380 = vmatpush1.bf16.msra.mxu0 0
        %1381 = vmatprep.subr.bf16.mxu0 0
        %1382 = vmatpush1.bf16.msra.mxu0 0
        %1383 = vmatprep.subr.bf16.mxu0 0
        %1384 = vmatpush1.bf16.msra.mxu0 0
        %1385 = vmatprep.subr.bf16.mxu0 0
        %1386 = vmatpush1.bf16.msra.mxu0 0
        %1387 = vmatprep.subr.bf16.mxu0 0
        %1388 = vmatpush1.bf16.msra.mxu0 0
        %1389 = vmatprep.subr.bf16.mxu0 %v1355
        %1390 = vmatpush1.bf16.msra.mxu0 %v1354
        %1391 = vmatprep.subr.bf16.mxu0 %v1353
        %1392 = vmatpush1.bf16.msra.mxu0 %v1352
        %1393 = vmatprep.subr.bf16.mxu0 0
        %1394 = vmatpush2.bf16.msra.mxu0 0
        %1395 = vmatprep.subr.bf16.mxu0 0
        %1396 = vmatpush2.bf16.msra.mxu0 0
        %1397 = vmatprep.subr.bf16.mxu0 0
        %1398 = vmatpush2.bf16.msra.mxu0 0
        %1399 = vmatprep.subr.bf16.mxu0 0
        %1400 = vmatpush2.bf16.msra.mxu0 0
        %1401 = vmatprep.subr.bf16.mxu0 0
        %1402 = vmatpush2.bf16.msra.mxu0 0
        %1403 = vmatprep.subr.bf16.mxu0 0
        %1404 = vmatpush2.bf16.msra.mxu0 0
        %1405 = vmatprep.subr.bf16.mxu0 0
        %1406 = vmatpush2.bf16.msra.mxu0 0
        %1407 = vmatprep.subr.bf16.mxu0 0
        %1408 = vmatpush2.bf16.msra.mxu0 0
        %1409 = vmatprep.mubr.bf16.mxu0 0
        %1410 = vmatmul.mubr.bf16.gmra.mxu0 %v1372
        %v1411 = vpop.f32.mrf.mxu0
        %v1412 = vadd.f32 0.0, %v1411
        %v1413 = vpop.f32.mrf.mxu0
        %v1414 = vadd.f32 0.0, %v1413
        %v1415 = vpop.f32.mrf.mxu0
        %v1416 = vadd.f32 0.0, %v1415
        %v1417 = vpop.f32.mrf.mxu0
        %v1418 = vadd.f32 0.0, %v1417
        %1419 = vmatprep.mubr.bf16.mxu0 0
        %1420 = vmatmul.mubr.bf16.gmra.mxu0 %v1375
        %v1421 = vpop.f32.mrf.mxu0
        %v1422 = vadd.f32 0.0, %v1421
        %v1423 = vpop.f32.mrf.mxu0
        %v1424 = vadd.f32 0.0, %v1423
        %v1425 = vpop.f32.mrf.mxu0
        %v1426 = vadd.f32 0.0, %v1425
        %v1427 = vpop.f32.mrf.mxu0
        %v1428 = vadd.f32 0.0, %v1427
        %1429 = vdwg.mxu0
        %v1430 = vpack.c.bf16 %v1416, %v1412
        %v1431 = vpack.c.bf16 %v1418, %v1414
        %v1432 = vpack.c.bf16 %v1426, %v1422
        %v1433 = vpack.c.bf16 %v1428, %v1424
        %1434 = vset.pattern.permute.xlu0 6
        %1435 = vperm.xlu0 %1434, %v260
        %v1436 = vpop.permute.xlu0 %1435
        %1438 = vset.pattern.permute.xlu0 6
        %1439 = vperm.xlu0 %1438, %v261
        %v1440 = vpop.permute.xlu0 %1439
        %1442 = vset.pattern.permute.xlu0 6
        %1443 = vperm.xlu0 %1442, %v262
        %v1444 = vpop.permute.xlu0 %1443
        %1446 = vset.pattern.permute.xlu0 6
        %1447 = vperm.xlu0 %1446, %v263
        %v1448 = vpop.permute.xlu0 %1447
        %1450 = vmatprep.subr.bf16.mxu0 %v446
        %1451 = vmatpush1.bf16.msra.mxu0 %v445
        %1452 = vmatprep.subr.bf16.mxu0 %v444
        %1453 = vmatpush1.bf16.msra.mxu0 %v443
        %1454 = vmatprep.subr.bf16.mxu0 %v442
        %1455 = vmatpush1.bf16.msra.mxu0 %v441
        %1456 = vmatprep.subr.bf16.mxu0 %v440
        %1457 = vmatpush1.bf16.msra.mxu0 %v439
        %1458 = vmatprep.subr.bf16.mxu0 %v438
        %1459 = vmatpush1.bf16.msra.mxu0 %v437
        %1460 = vmatprep.subr.bf16.mxu0 %v436
        %1461 = vmatpush1.bf16.msra.mxu0 %v435
        %1462 = vmatprep.subr.bf16.mxu0 %v434
        %1463 = vmatpush1.bf16.msra.mxu0 %v433
        %1464 = vmatprep.subr.bf16.mxu0 %v432
        %1465 = vmatpush1.bf16.msra.mxu0 %v431
        %1466 = vmatprep.subr.bf16.mxu0 %v462
        %1467 = vmatpush2.bf16.msra.mxu0 %v461
        %1468 = vmatprep.subr.bf16.mxu0 %v460
        %1469 = vmatpush2.bf16.msra.mxu0 %v459
        %1470 = vmatprep.subr.bf16.mxu0 %v458
        %1471 = vmatpush2.bf16.msra.mxu0 %v457
        %1472 = vmatprep.subr.bf16.mxu0 %v456
        %1473 = vmatpush2.bf16.msra.mxu0 %v455
        %1474 = vmatprep.subr.bf16.mxu0 %v454
        %1475 = vmatpush2.bf16.msra.mxu0 %v453
        %1476 = vmatprep.subr.bf16.mxu0 %v452
        %1477 = vmatpush2.bf16.msra.mxu0 %v451
        %1478 = vmatprep.subr.bf16.mxu0 %v450
        %1479 = vmatpush2.bf16.msra.mxu0 %v449
        %1480 = vmatprep.subr.bf16.mxu0 %v448
        %1481 = vmatpush2.bf16.msra.mxu0 %v447
        %1482 = vmatprep.mubr.bf16.mxu0 %v1431
        %1483 = vmatmul.mubr.bf16.gmra.mxu0 %v1430
        %v1484 = vpop.f32.mrf.mxu0
        %v1485 = vadd.f32 %v1436, %v1484
        %v1486 = vpop.f32.mrf.mxu0
        %v1487 = vadd.f32 %v1436, %v1486
        %v1488 = vpop.f32.mrf.mxu0
        %v1489 = vadd.f32 %v1440, %v1488
        %v1490 = vpop.f32.mrf.mxu0
        %v1491 = vadd.f32 %v1440, %v1490
        %1492 = vmatprep.mubr.bf16.mxu0 %v1433
        %1493 = vmatmul.mubr.bf16.gmra.mxu0 %v1432
        %v1494 = vpop.f32.mrf.mxu0
        %v1495 = vadd.f32 %v1444, %v1494
        %v1496 = vpop.f32.mrf.mxu0
        %v1497 = vadd.f32 %v1444, %v1496
        %v1498 = vpop.f32.mrf.mxu0
        %v1499 = vadd.f32 %v1448, %v1498
        %v1500 = vpop.f32.mrf.mxu0
        %v1501 = vadd.f32 %v1448, %v1500
        %1502 = vdwg.mxu0
        %v1503 = vmax.f32 %v1485, 0.0
        %v1504 = vmax.f32 %v1487, 0.0
        %v1505 = vmax.f32 %v1489, 0.0
        %v1506 = vmax.f32 %v1491, 0.0
        %v1507 = vmax.f32 %v1495, 0.0
        %v1508 = vmax.f32 %v1497, 0.0
        %v1509 = vmax.f32 %v1499, 0.0
        %v1510 = vmax.f32 %v1501, 0.0
        %v1511 = vpack.c.bf16 %v1505, %v1503
        %v1512 = vpack.c.bf16 %v1506, %v1504
        %v1513 = vpack.c.bf16 %v1509, %v1507
        %v1514 = vpack.c.bf16 %v1510, %v1508
        %s1515 = scalar_lea.vmem [#allocation5], 112
        %v1516 = vld [vmem:[%s1515] sm:$0xf]
        %v1517 = vld [vmem:[%s1515 + $0x4] sm:$0xf]
        %v1518 = vld [vmem:[%s1515 + $0x8] sm:$0xf]
        %v1519 = vld [vmem:[%s1515 + $0xc] sm:$0xf]
        %v1524 = vunpack.c.l.b16 %v1516
        %v1525 = vunpack.c.l.b16 %v1517
        %v1526 = vunpack.c.l.b16 %v1518
        %v1527 = vunpack.c.l.b16 %v1519
        %v1528 = vpack.c.b16 %v1525, %v1524
        %v1529 = vpack.c.b16 %v1527, %v1526
        %v1531 = vsel %vm575, %v1528, 0
        %v1534 = vsel %vm575, %v1529, 0
        %1536 = vmatprep.subr.bf16.mxu0 0
        %1537 = vmatpush1.bf16.msra.mxu0 0
        %1538 = vmatprep.subr.bf16.mxu0 0
        %1539 = vmatpush1.bf16.msra.mxu0 0
        %1540 = vmatprep.subr.bf16.mxu0 0
        %1541 = vmatpush1.bf16.msra.mxu0 0
        %1542 = vmatprep.subr.bf16.mxu0 0
        %1543 = vmatpush1.bf16.msra.mxu0 0
        %1544 = vmatprep.subr.bf16.mxu0 0
        %1545 = vmatpush1.bf16.msra.mxu0 0
        %1546 = vmatprep.subr.bf16.mxu0 0
        %1547 = vmatpush1.bf16.msra.mxu0 0
        %1548 = vmatprep.subr.bf16.mxu0 %v1514
        %1549 = vmatpush1.bf16.msra.mxu0 %v1513
        %1550 = vmatprep.subr.bf16.mxu0 %v1512
        %1551 = vmatpush1.bf16.msra.mxu0 %v1511
        %1552 = vmatprep.subr.bf16.mxu0 0
        %1553 = vmatpush2.bf16.msra.mxu0 0
        %1554 = vmatprep.subr.bf16.mxu0 0
        %1555 = vmatpush2.bf16.msra.mxu0 0
        %1556 = vmatprep.subr.bf16.mxu0 0
        %1557 = vmatpush2.bf16.msra.mxu0 0
        %1558 = vmatprep.subr.bf16.mxu0 0
        %1559 = vmatpush2.bf16.msra.mxu0 0
        %1560 = vmatprep.subr.bf16.mxu0 0
        %1561 = vmatpush2.bf16.msra.mxu0 0
        %1562 = vmatprep.subr.bf16.mxu0 0
        %1563 = vmatpush2.bf16.msra.mxu0 0
        %1564 = vmatprep.subr.bf16.mxu0 0
        %1565 = vmatpush2.bf16.msra.mxu0 0
        %1566 = vmatprep.subr.bf16.mxu0 0
        %1567 = vmatpush2.bf16.msra.mxu0 0
        %1568 = vmatprep.mubr.bf16.mxu0 0
        %1569 = vmatmul.mubr.bf16.gmra.mxu0 %v1531
        %v1570 = vpop.f32.mrf.mxu0
        %v1571 = vadd.f32 0.0, %v1570
        %v1572 = vpop.f32.mrf.mxu0
        %v1573 = vadd.f32 0.0, %v1572
        %v1574 = vpop.f32.mrf.mxu0
        %v1575 = vadd.f32 0.0, %v1574
        %v1576 = vpop.f32.mrf.mxu0
        %v1577 = vadd.f32 0.0, %v1576
        %1578 = vmatprep.mubr.bf16.mxu0 0
        %1579 = vmatmul.mubr.bf16.gmra.mxu0 %v1534
        %v1580 = vpop.f32.mrf.mxu0
        %v1581 = vadd.f32 0.0, %v1580
        %v1582 = vpop.f32.mrf.mxu0
        %v1583 = vadd.f32 0.0, %v1582
        %v1584 = vpop.f32.mrf.mxu0
        %v1585 = vadd.f32 0.0, %v1584
        %v1586 = vpop.f32.mrf.mxu0
        %v1587 = vadd.f32 0.0, %v1586
        %1588 = vdwg.mxu0
        %v1589 = vpack.c.bf16 %v1575, %v1571
        %v1590 = vpack.c.bf16 %v1577, %v1573
        %v1591 = vpack.c.bf16 %v1585, %v1581
        %v1592 = vpack.c.bf16 %v1587, %v1583
        %1593 = vset.pattern.permute.xlu0 7
        %1594 = vperm.xlu0 %1593, %v260
        %v1595 = vpop.permute.xlu0 %1594
        %1597 = vset.pattern.permute.xlu0 7
        %1598 = vperm.xlu0 %1597, %v261
        %v1599 = vpop.permute.xlu0 %1598
        %1601 = vset.pattern.permute.xlu0 7
        %1602 = vperm.xlu0 %1601, %v262
        %v1603 = vpop.permute.xlu0 %1602
        %1605 = vset.pattern.permute.xlu0 7
        %1606 = vperm.xlu0 %1605, %v263
        %v1607 = vpop.permute.xlu0 %1606
        %1609 = vmatprep.subr.bf16.mxu0 %v446
        %1610 = vmatpush1.bf16.msra.mxu0 %v445
        %1611 = vmatprep.subr.bf16.mxu0 %v444
        %1612 = vmatpush1.bf16.msra.mxu0 %v443
        %1613 = vmatprep.subr.bf16.mxu0 %v442
        %1614 = vmatpush1.bf16.msra.mxu0 %v441
        %1615 = vmatprep.subr.bf16.mxu0 %v440
        %1616 = vmatpush1.bf16.msra.mxu0 %v439
        %1617 = vmatprep.subr.bf16.mxu0 %v438
        %1618 = vmatpush1.bf16.msra.mxu0 %v437
        %1619 = vmatprep.subr.bf16.mxu0 %v436
        %1620 = vmatpush1.bf16.msra.mxu0 %v435
        %1621 = vmatprep.subr.bf16.mxu0 %v434
        %1622 = vmatpush1.bf16.msra.mxu0 %v433
        %1623 = vmatprep.subr.bf16.mxu0 %v432
        %1624 = vmatpush1.bf16.msra.mxu0 %v431
        %1625 = vmatprep.subr.bf16.mxu0 %v462
        %1626 = vmatpush2.bf16.msra.mxu0 %v461
        %1627 = vmatprep.subr.bf16.mxu0 %v460
        %1628 = vmatpush2.bf16.msra.mxu0 %v459
        %1629 = vmatprep.subr.bf16.mxu0 %v458
        %1630 = vmatpush2.bf16.msra.mxu0 %v457
        %1631 = vmatprep.subr.bf16.mxu0 %v456
        %1632 = vmatpush2.bf16.msra.mxu0 %v455
        %1633 = vmatprep.subr.bf16.mxu0 %v454
        %1634 = vmatpush2.bf16.msra.mxu0 %v453
        %1635 = vmatprep.subr.bf16.mxu0 %v452
        %1636 = vmatpush2.bf16.msra.mxu0 %v451
        %1637 = vmatprep.subr.bf16.mxu0 %v450
        %1638 = vmatpush2.bf16.msra.mxu0 %v449
        %1639 = vmatprep.subr.bf16.mxu0 %v448
        %1640 = vmatpush2.bf16.msra.mxu0 %v447
        %1641 = vmatprep.mubr.bf16.mxu0 %v1590
        %1642 = vmatmul.mubr.bf16.gmra.mxu0 %v1589
        %v1643 = vpop.f32.mrf.mxu0
        %v1644 = vadd.f32 %v1595, %v1643
        %v1645 = vpop.f32.mrf.mxu0
        %v1646 = vadd.f32 %v1595, %v1645
        %v1647 = vpop.f32.mrf.mxu0
        %v1648 = vadd.f32 %v1599, %v1647
        %v1649 = vpop.f32.mrf.mxu0
        %v1650 = vadd.f32 %v1599, %v1649
        %1651 = vmatprep.mubr.bf16.mxu0 %v1592
        %1652 = vmatmul.mubr.bf16.gmra.mxu0 %v1591
        %v1653 = vpop.f32.mrf.mxu0
        %v1654 = vadd.f32 %v1603, %v1653
        %v1655 = vpop.f32.mrf.mxu0
        %v1656 = vadd.f32 %v1603, %v1655
        %v1657 = vpop.f32.mrf.mxu0
        %v1658 = vadd.f32 %v1607, %v1657
        %v1659 = vpop.f32.mrf.mxu0
        %v1660 = vadd.f32 %v1607, %v1659
        %1661 = vdwg.mxu0
        %v1662 = vmax.f32 %v1644, 0.0
        %v1663 = vmax.f32 %v1646, 0.0
        %v1664 = vmax.f32 %v1648, 0.0
        %v1665 = vmax.f32 %v1650, 0.0
        %v1666 = vmax.f32 %v1654, 0.0
        %v1667 = vmax.f32 %v1656, 0.0
        %v1668 = vmax.f32 %v1658, 0.0
        %v1669 = vmax.f32 %v1660, 0.0
        %v1670 = vpack.c.bf16 %v1664, %v1662
        %v1671 = vpack.c.bf16 %v1665, %v1663
        %v1672 = vpack.c.bf16 %v1668, %v1666
        %v1673 = vpack.c.bf16 %v1669, %v1667
        %s1674 = scalar_lea.vmem [#allocation5], 128
        %v1675 = vld [vmem:[%s1674] sm:$0xf]
        %v1676 = vld [vmem:[%s1674 + $0x4] sm:$0xf]
        %v1677 = vld [vmem:[%s1674 + $0x8] sm:$0xf]
        %v1678 = vld [vmem:[%s1674 + $0xc] sm:$0xf]
        %v1683 = vunpack.c.l.b16 %v1675
        %v1684 = vunpack.c.l.b16 %v1676
        %v1685 = vunpack.c.l.b16 %v1677
        %v1686 = vunpack.c.l.b16 %v1678
        %v1687 = vpack.c.b16 %v1684, %v1683
        %v1688 = vpack.c.b16 %v1686, %v1685
        %v1690 = vsel %vm575, %v1687, 0
        %v1693 = vsel %vm575, %v1688, 0
        %1695 = vmatprep.subr.bf16.mxu0 0
        %1696 = vmatpush1.bf16.msra.mxu0 0
        %1697 = vmatprep.subr.bf16.mxu0 0
        %1698 = vmatpush1.bf16.msra.mxu0 0
        %1699 = vmatprep.subr.bf16.mxu0 0
        %1700 = vmatpush1.bf16.msra.mxu0 0
        %1701 = vmatprep.subr.bf16.mxu0 0
        %1702 = vmatpush1.bf16.msra.mxu0 0
        %1703 = vmatprep.subr.bf16.mxu0 0
        %1704 = vmatpush1.bf16.msra.mxu0 0
        %1705 = vmatprep.subr.bf16.mxu0 0
        %1706 = vmatpush1.bf16.msra.mxu0 0
        %1707 = vmatprep.subr.bf16.mxu0 %v1673
        %1708 = vmatpush1.bf16.msra.mxu0 %v1672
        %1709 = vmatprep.subr.bf16.mxu0 %v1671
        %1710 = vmatpush1.bf16.msra.mxu0 %v1670
        %1711 = vmatprep.subr.bf16.mxu0 0
        %1712 = vmatpush2.bf16.msra.mxu0 0
        %1713 = vmatprep.subr.bf16.mxu0 0
        %1714 = vmatpush2.bf16.msra.mxu0 0
        %1715 = vmatprep.subr.bf16.mxu0 0
        %1716 = vmatpush2.bf16.msra.mxu0 0
        %1717 = vmatprep.subr.bf16.mxu0 0
        %1718 = vmatpush2.bf16.msra.mxu0 0
        %1719 = vmatprep.subr.bf16.mxu0 0
        %1720 = vmatpush2.bf16.msra.mxu0 0
        %1721 = vmatprep.subr.bf16.mxu0 0
        %1722 = vmatpush2.bf16.msra.mxu0 0
        %1723 = vmatprep.subr.bf16.mxu0 0
        %1724 = vmatpush2.bf16.msra.mxu0 0
        %1725 = vmatprep.subr.bf16.mxu0 0
        %1726 = vmatpush2.bf16.msra.mxu0 0
        %1727 = vmatprep.mubr.bf16.mxu0 0
        %1728 = vmatmul.mubr.bf16.gmra.mxu0 %v1690
        %v1729 = vpop.f32.mrf.mxu0
        %v1730 = vadd.f32 0.0, %v1729
        %v1731 = vpop.f32.mrf.mxu0
        %v1732 = vadd.f32 0.0, %v1731
        %v1733 = vpop.f32.mrf.mxu0
        %v1734 = vadd.f32 0.0, %v1733
        %v1735 = vpop.f32.mrf.mxu0
        %v1736 = vadd.f32 0.0, %v1735
        %1737 = vmatprep.mubr.bf16.mxu0 0
        %1738 = vmatmul.mubr.bf16.gmra.mxu0 %v1693
        %v1739 = vpop.f32.mrf.mxu0
        %v1740 = vadd.f32 0.0, %v1739
        %v1741 = vpop.f32.mrf.mxu0
        %v1742 = vadd.f32 0.0, %v1741
        %v1743 = vpop.f32.mrf.mxu0
        %v1744 = vadd.f32 0.0, %v1743
        %v1745 = vpop.f32.mrf.mxu0
        %v1746 = vadd.f32 0.0, %v1745
        %1747 = vdwg.mxu0
        %v1748 = vpack.c.bf16 %v1734, %v1730
        %v1749 = vpack.c.bf16 %v1736, %v1732
        %v1750 = vpack.c.bf16 %v1744, %v1740
        %v1751 = vpack.c.bf16 %v1746, %v1742
        %1752 = vset.pattern.permute.xlu0 8
        %1753 = vperm.xlu0 %1752, %v260
        %v1754 = vpop.permute.xlu0 %1753
        %1756 = vset.pattern.permute.xlu0 8
        %1757 = vperm.xlu0 %1756, %v261
        %v1758 = vpop.permute.xlu0 %1757
        %1760 = vset.pattern.permute.xlu0 8
        %1761 = vperm.xlu0 %1760, %v262
        %v1762 = vpop.permute.xlu0 %1761
        %1764 = vset.pattern.permute.xlu0 8
        %1765 = vperm.xlu0 %1764, %v263
        %v1766 = vpop.permute.xlu0 %1765
        %1768 = vmatprep.subr.bf16.mxu0 %v446
        %1769 = vmatpush1.bf16.msra.mxu0 %v445
        %1770 = vmatprep.subr.bf16.mxu0 %v444
        %1771 = vmatpush1.bf16.msra.mxu0 %v443
        %1772 = vmatprep.subr.bf16.mxu0 %v442
        %1773 = vmatpush1.bf16.msra.mxu0 %v441
        %1774 = vmatprep.subr.bf16.mxu0 %v440
        %1775 = vmatpush1.bf16.msra.mxu0 %v439
        %1776 = vmatprep.subr.bf16.mxu0 %v438
        %1777 = vmatpush1.bf16.msra.mxu0 %v437
        %1778 = vmatprep.subr.bf16.mxu0 %v436
        %1779 = vmatpush1.bf16.msra.mxu0 %v435
        %1780 = vmatprep.subr.bf16.mxu0 %v434
        %1781 = vmatpush1.bf16.msra.mxu0 %v433
        %1782 = vmatprep.subr.bf16.mxu0 %v432
        %1783 = vmatpush1.bf16.msra.mxu0 %v431
        %1784 = vmatprep.subr.bf16.mxu0 %v462
        %1785 = vmatpush2.bf16.msra.mxu0 %v461
        %1786 = vmatprep.subr.bf16.mxu0 %v460
        %1787 = vmatpush2.bf16.msra.mxu0 %v459
        %1788 = vmatprep.subr.bf16.mxu0 %v458
        %1789 = vmatpush2.bf16.msra.mxu0 %v457
        %1790 = vmatprep.subr.bf16.mxu0 %v456
        %1791 = vmatpush2.bf16.msra.mxu0 %v455
        %1792 = vmatprep.subr.bf16.mxu0 %v454
        %1793 = vmatpush2.bf16.msra.mxu0 %v453
        %1794 = vmatprep.subr.bf16.mxu0 %v452
        %1795 = vmatpush2.bf16.msra.mxu0 %v451
        %1796 = vmatprep.subr.bf16.mxu0 %v450
        %1797 = vmatpush2.bf16.msra.mxu0 %v449
        %1798 = vmatprep.subr.bf16.mxu0 %v448
        %1799 = vmatpush2.bf16.msra.mxu0 %v447
        %1800 = vmatprep.mubr.bf16.mxu0 %v1749
        %1801 = vmatmul.mubr.bf16.gmra.mxu0 %v1748
        %v1802 = vpop.f32.mrf.mxu0
        %v1803 = vadd.f32 %v1754, %v1802
        %v1804 = vpop.f32.mrf.mxu0
        %v1805 = vadd.f32 %v1754, %v1804
        %v1806 = vpop.f32.mrf.mxu0
        %v1807 = vadd.f32 %v1758, %v1806
        %v1808 = vpop.f32.mrf.mxu0
        %v1809 = vadd.f32 %v1758, %v1808
        %1810 = vmatprep.mubr.bf16.mxu0 %v1751
        %1811 = vmatmul.mubr.bf16.gmra.mxu0 %v1750
        %v1812 = vpop.f32.mrf.mxu0
        %v1813 = vadd.f32 %v1762, %v1812
        %v1814 = vpop.f32.mrf.mxu0
        %v1815 = vadd.f32 %v1762, %v1814
        %v1816 = vpop.f32.mrf.mxu0
        %v1817 = vadd.f32 %v1766, %v1816
        %v1818 = vpop.f32.mrf.mxu0
        %v1819 = vadd.f32 %v1766, %v1818
        %1820 = vdwg.mxu0
        %v1821 = vmax.f32 %v1803, 0.0
        %v1822 = vmax.f32 %v1805, 0.0
        %v1823 = vmax.f32 %v1807, 0.0
        %v1824 = vmax.f32 %v1809, 0.0
        %v1825 = vmax.f32 %v1813, 0.0
        %v1826 = vmax.f32 %v1815, 0.0
        %v1827 = vmax.f32 %v1817, 0.0
        %v1828 = vmax.f32 %v1819, 0.0
        %v1829 = vpack.c.bf16 %v1823, %v1821
        %v1830 = vpack.c.bf16 %v1824, %v1822
        %v1831 = vpack.c.bf16 %v1827, %v1825
        %v1832 = vpack.c.bf16 %v1828, %v1826
        %s1833 = scalar_lea.vmem [#allocation5], 144
        %v1834 = vld [vmem:[%s1833] sm:$0xf]
        %v1835 = vld [vmem:[%s1833 + $0x4] sm:$0xf]
        %v1836 = vld [vmem:[%s1833 + $0x8] sm:$0xf]
        %v1837 = vld [vmem:[%s1833 + $0xc] sm:$0xf]
        %v1842 = vunpack.c.l.b16 %v1834
        %v1843 = vunpack.c.l.b16 %v1835
        %v1844 = vunpack.c.l.b16 %v1836
        %v1845 = vunpack.c.l.b16 %v1837
        %v1846 = vpack.c.b16 %v1843, %v1842
        %v1847 = vpack.c.b16 %v1845, %v1844
        %v1849 = vsel %vm575, %v1846, 0
        %v1852 = vsel %vm575, %v1847, 0
        %1854 = vmatprep.subr.bf16.mxu0 0
        %1855 = vmatpush1.bf16.msra.mxu0 0
        %1856 = vmatprep.subr.bf16.mxu0 0
        %1857 = vmatpush1.bf16.msra.mxu0 0
        %1858 = vmatprep.subr.bf16.mxu0 0
        %1859 = vmatpush1.bf16.msra.mxu0 0
        %1860 = vmatprep.subr.bf16.mxu0 0
        %1861 = vmatpush1.bf16.msra.mxu0 0
        %1862 = vmatprep.subr.bf16.mxu0 0
        %1863 = vmatpush1.bf16.msra.mxu0 0
        %1864 = vmatprep.subr.bf16.mxu0 0
        %1865 = vmatpush1.bf16.msra.mxu0 0
        %1866 = vmatprep.subr.bf16.mxu0 %v1832
        %1867 = vmatpush1.bf16.msra.mxu0 %v1831
        %1868 = vmatprep.subr.bf16.mxu0 %v1830
        %1869 = vmatpush1.bf16.msra.mxu0 %v1829
        %1870 = vmatprep.subr.bf16.mxu0 0
        %1871 = vmatpush2.bf16.msra.mxu0 0
        %1872 = vmatprep.subr.bf16.mxu0 0
        %1873 = vmatpush2.bf16.msra.mxu0 0
        %1874 = vmatprep.subr.bf16.mxu0 0
        %1875 = vmatpush2.bf16.msra.mxu0 0
        %1876 = vmatprep.subr.bf16.mxu0 0
        %1877 = vmatpush2.bf16.msra.mxu0 0
        %1878 = vmatprep.subr.bf16.mxu0 0
        %1879 = vmatpush2.bf16.msra.mxu0 0
        %1880 = vmatprep.subr.bf16.mxu0 0
        %1881 = vmatpush2.bf16.msra.mxu0 0
        %1882 = vmatprep.subr.bf16.mxu0 0
        %1883 = vmatpush2.bf16.msra.mxu0 0
        %1884 = vmatprep.subr.bf16.mxu0 0
        %1885 = vmatpush2.bf16.msra.mxu0 0
        %1886 = vmatprep.mubr.bf16.mxu0 0
        %1887 = vmatmul.mubr.bf16.gmra.mxu0 %v1849
        %v1888 = vpop.f32.mrf.mxu0
        %v1889 = vadd.f32 0.0, %v1888
        %v1890 = vpop.f32.mrf.mxu0
        %v1891 = vadd.f32 0.0, %v1890
        %v1892 = vpop.f32.mrf.mxu0
        %v1893 = vadd.f32 0.0, %v1892
        %v1894 = vpop.f32.mrf.mxu0
        %v1895 = vadd.f32 0.0, %v1894
        %1896 = vmatprep.mubr.bf16.mxu0 0
        %1897 = vmatmul.mubr.bf16.gmra.mxu0 %v1852
        %v1898 = vpop.f32.mrf.mxu0
        %v1899 = vadd.f32 0.0, %v1898
        %v1900 = vpop.f32.mrf.mxu0
        %v1901 = vadd.f32 0.0, %v1900
        %v1902 = vpop.f32.mrf.mxu0
        %v1903 = vadd.f32 0.0, %v1902
        %v1904 = vpop.f32.mrf.mxu0
        %v1905 = vadd.f32 0.0, %v1904
        %1906 = vdwg.mxu0
        %v1907 = vpack.c.bf16 %v1893, %v1889
        %v1908 = vpack.c.bf16 %v1895, %v1891
        %v1909 = vpack.c.bf16 %v1903, %v1899
        %v1910 = vpack.c.bf16 %v1905, %v1901
        %1911 = vset.pattern.permute.xlu0 9
        %1912 = vperm.xlu0 %1911, %v260
        %v1913 = vpop.permute.xlu0 %1912
        %1915 = vset.pattern.permute.xlu0 9
        %1916 = vperm.xlu0 %1915, %v261
        %v1917 = vpop.permute.xlu0 %1916
        %1919 = vset.pattern.permute.xlu0 9
        %1920 = vperm.xlu0 %1919, %v262
        %v1921 = vpop.permute.xlu0 %1920
        %1923 = vset.pattern.permute.xlu0 9
        %1924 = vperm.xlu0 %1923, %v263
        %v1925 = vpop.permute.xlu0 %1924
        %1927 = vmatprep.subr.bf16.mxu0 %v446
        %1928 = vmatpush1.bf16.msra.mxu0 %v445
        %1929 = vmatprep.subr.bf16.mxu0 %v444
        %1930 = vmatpush1.bf16.msra.mxu0 %v443
        %1931 = vmatprep.subr.bf16.mxu0 %v442
        %1932 = vmatpush1.bf16.msra.mxu0 %v441
        %1933 = vmatprep.subr.bf16.mxu0 %v440
        %1934 = vmatpush1.bf16.msra.mxu0 %v439
        %1935 = vmatprep.subr.bf16.mxu0 %v438
        %1936 = vmatpush1.bf16.msra.mxu0 %v437
        %1937 = vmatprep.subr.bf16.mxu0 %v436
        %1938 = vmatpush1.bf16.msra.mxu0 %v435
        %1939 = vmatprep.subr.bf16.mxu0 %v434
        %1940 = vmatpush1.bf16.msra.mxu0 %v433
        %1941 = vmatprep.subr.bf16.mxu0 %v432
        %1942 = vmatpush1.bf16.msra.mxu0 %v431
        %1943 = vmatprep.subr.bf16.mxu0 %v462
        %1944 = vmatpush2.bf16.msra.mxu0 %v461
        %1945 = vmatprep.subr.bf16.mxu0 %v460
        %1946 = vmatpush2.bf16.msra.mxu0 %v459
        %1947 = vmatprep.subr.bf16.mxu0 %v458
        %1948 = vmatpush2.bf16.msra.mxu0 %v457
        %1949 = vmatprep.subr.bf16.mxu0 %v456
        %1950 = vmatpush2.bf16.msra.mxu0 %v455
        %1951 = vmatprep.subr.bf16.mxu0 %v454
        %1952 = vmatpush2.bf16.msra.mxu0 %v453
        %1953 = vmatprep.subr.bf16.mxu0 %v452
        %1954 = vmatpush2.bf16.msra.mxu0 %v451
        %1955 = vmatprep.subr.bf16.mxu0 %v450
        %1956 = vmatpush2.bf16.msra.mxu0 %v449
        %1957 = vmatprep.subr.bf16.mxu0 %v448
        %1958 = vmatpush2.bf16.msra.mxu0 %v447
        %1959 = vmatprep.mubr.bf16.mxu0 %v1908
        %1960 = vmatmul.mubr.bf16.gmra.mxu0 %v1907
        %v1961 = vpop.f32.mrf.mxu0
        %v1962 = vadd.f32 %v1913, %v1961
        %v1963 = vpop.f32.mrf.mxu0
        %v1964 = vadd.f32 %v1913, %v1963
        %v1965 = vpop.f32.mrf.mxu0
        %v1966 = vadd.f32 %v1917, %v1965
        %v1967 = vpop.f32.mrf.mxu0
        %v1968 = vadd.f32 %v1917, %v1967
        %1969 = vmatprep.mubr.bf16.mxu0 %v1910
        %1970 = vmatmul.mubr.bf16.gmra.mxu0 %v1909
        %v1971 = vpop.f32.mrf.mxu0
        %v1972 = vadd.f32 %v1921, %v1971
        %v1973 = vpop.f32.mrf.mxu0
        %v1974 = vadd.f32 %v1921, %v1973
        %v1975 = vpop.f32.mrf.mxu0
        %v1976 = vadd.f32 %v1925, %v1975
        %v1977 = vpop.f32.mrf.mxu0
        %v1978 = vadd.f32 %v1925, %v1977
        %1979 = vdwg.mxu0
        %v1980 = vmax.f32 %v1962, 0.0
        %v1981 = vmax.f32 %v1964, 0.0
        %v1982 = vmax.f32 %v1966, 0.0
        %v1983 = vmax.f32 %v1968, 0.0
        %v1984 = vmax.f32 %v1972, 0.0
        %v1985 = vmax.f32 %v1974, 0.0
        %v1986 = vmax.f32 %v1976, 0.0
        %v1987 = vmax.f32 %v1978, 0.0
        %v1988 = vpack.c.bf16 %v1982, %v1980
        %v1989 = vpack.c.bf16 %v1983, %v1981
        %v1990 = vpack.c.bf16 %v1986, %v1984
        %v1991 = vpack.c.bf16 %v1987, %v1985
        %s1992 = scalar_lea.vmem [#allocation5], 160
        %v1993 = vld [vmem:[%s1992] sm:$0xf]
        %v1994 = vld [vmem:[%s1992 + $0x4] sm:$0xf]
        %v1995 = vld [vmem:[%s1992 + $0x8] sm:$0xf]
        %v1996 = vld [vmem:[%s1992 + $0xc] sm:$0xf]
        %v2001 = vunpack.c.l.b16 %v1993
        %v2002 = vunpack.c.l.b16 %v1994
        %v2003 = vunpack.c.l.b16 %v1995
        %v2004 = vunpack.c.l.b16 %v1996
        %v2005 = vpack.c.b16 %v2002, %v2001
        %v2006 = vpack.c.b16 %v2004, %v2003
        %v2008 = vsel %vm575, %v2005, 0
        %v2011 = vsel %vm575, %v2006, 0
        %2013 = vmatprep.subr.bf16.mxu0 0
        %2014 = vmatpush1.bf16.msra.mxu0 0
        %2015 = vmatprep.subr.bf16.mxu0 0
        %2016 = vmatpush1.bf16.msra.mxu0 0
        %2017 = vmatprep.subr.bf16.mxu0 0
        %2018 = vmatpush1.bf16.msra.mxu0 0
        %2019 = vmatprep.subr.bf16.mxu0 0
        %2020 = vmatpush1.bf16.msra.mxu0 0
        %2021 = vmatprep.subr.bf16.mxu0 0
        %2022 = vmatpush1.bf16.msra.mxu0 0
        %2023 = vmatprep.subr.bf16.mxu0 0
        %2024 = vmatpush1.bf16.msra.mxu0 0
        %2025 = vmatprep.subr.bf16.mxu0 %v1991
        %2026 = vmatpush1.bf16.msra.mxu0 %v1990
        %2027 = vmatprep.subr.bf16.mxu0 %v1989
        %2028 = vmatpush1.bf16.msra.mxu0 %v1988
        %2029 = vmatprep.subr.bf16.mxu0 0
        %2030 = vmatpush2.bf16.msra.mxu0 0
        %2031 = vmatprep.subr.bf16.mxu0 0
        %2032 = vmatpush2.bf16.msra.mxu0 0
        %2033 = vmatprep.subr.bf16.mxu0 0
        %2034 = vmatpush2.bf16.msra.mxu0 0
        %2035 = vmatprep.subr.bf16.mxu0 0
        %2036 = vmatpush2.bf16.msra.mxu0 0
        %2037 = vmatprep.subr.bf16.mxu0 0
        %2038 = vmatpush2.bf16.msra.mxu0 0
        %2039 = vmatprep.subr.bf16.mxu0 0
        %2040 = vmatpush2.bf16.msra.mxu0 0
        %2041 = vmatprep.subr.bf16.mxu0 0
        %2042 = vmatpush2.bf16.msra.mxu0 0
        %2043 = vmatprep.subr.bf16.mxu0 0
        %2044 = vmatpush2.bf16.msra.mxu0 0
        %2045 = vmatprep.mubr.bf16.mxu0 0
        %2046 = vmatmul.mubr.bf16.gmra.mxu0 %v2008
        %v2047 = vpop.f32.mrf.mxu0
        %v2048 = vadd.f32 0.0, %v2047
        %v2049 = vpop.f32.mrf.mxu0
        %v2050 = vadd.f32 0.0, %v2049
        %v2051 = vpop.f32.mrf.mxu0
        %v2052 = vadd.f32 0.0, %v2051
        %v2053 = vpop.f32.mrf.mxu0
        %v2054 = vadd.f32 0.0, %v2053
        %2055 = vmatprep.mubr.bf16.mxu0 0
        %2056 = vmatmul.mubr.bf16.gmra.mxu0 %v2011
        %v2057 = vpop.f32.mrf.mxu0
        %v2058 = vadd.f32 0.0, %v2057
        %v2059 = vpop.f32.mrf.mxu0
        %v2060 = vadd.f32 0.0, %v2059
        %v2061 = vpop.f32.mrf.mxu0
        %v2062 = vadd.f32 0.0, %v2061
        %v2063 = vpop.f32.mrf.mxu0
        %v2064 = vadd.f32 0.0, %v2063
        %2065 = vdwg.mxu0
        %v2066 = vpack.c.bf16 %v2052, %v2048
        %v2067 = vpack.c.bf16 %v2054, %v2050
        %v2068 = vpack.c.bf16 %v2062, %v2058
        %v2069 = vpack.c.bf16 %v2064, %v2060
        %2070 = vset.pattern.permute.xlu0 10
        %2071 = vperm.xlu0 %2070, %v260
        %v2072 = vpop.permute.xlu0 %2071
        %2074 = vset.pattern.permute.xlu0 10
        %2075 = vperm.xlu0 %2074, %v261
        %v2076 = vpop.permute.xlu0 %2075
        %2078 = vset.pattern.permute.xlu0 10
        %2079 = vperm.xlu0 %2078, %v262
        %v2080 = vpop.permute.xlu0 %2079
        %2082 = vset.pattern.permute.xlu0 10
        %2083 = vperm.xlu0 %2082, %v263
        %v2084 = vpop.permute.xlu0 %2083
        %2086 = vmatprep.subr.bf16.mxu0 %v446
        %2087 = vmatpush1.bf16.msra.mxu0 %v445
        %2088 = vmatprep.subr.bf16.mxu0 %v444
        %2089 = vmatpush1.bf16.msra.mxu0 %v443
        %2090 = vmatprep.subr.bf16.mxu0 %v442
        %2091 = vmatpush1.bf16.msra.mxu0 %v441
        %2092 = vmatprep.subr.bf16.mxu0 %v440
        %2093 = vmatpush1.bf16.msra.mxu0 %v439
        %2094 = vmatprep.subr.bf16.mxu0 %v438
        %2095 = vmatpush1.bf16.msra.mxu0 %v437
        %2096 = vmatprep.subr.bf16.mxu0 %v436
        %2097 = vmatpush1.bf16.msra.mxu0 %v435
        %2098 = vmatprep.subr.bf16.mxu0 %v434
        %2099 = vmatpush1.bf16.msra.mxu0 %v433
        %2100 = vmatprep.subr.bf16.mxu0 %v432
        %2101 = vmatpush1.bf16.msra.mxu0 %v431
        %2102 = vmatprep.subr.bf16.mxu0 %v462
        %2103 = vmatpush2.bf16.msra.mxu0 %v461
        %2104 = vmatprep.subr.bf16.mxu0 %v460
        %2105 = vmatpush2.bf16.msra.mxu0 %v459
        %2106 = vmatprep.subr.bf16.mxu0 %v458
        %2107 = vmatpush2.bf16.msra.mxu0 %v457
        %2108 = vmatprep.subr.bf16.mxu0 %v456
        %2109 = vmatpush2.bf16.msra.mxu0 %v455
        %2110 = vmatprep.subr.bf16.mxu0 %v454
        %2111 = vmatpush2.bf16.msra.mxu0 %v453
        %2112 = vmatprep.subr.bf16.mxu0 %v452
        %2113 = vmatpush2.bf16.msra.mxu0 %v451
        %2114 = vmatprep.subr.bf16.mxu0 %v450
        %2115 = vmatpush2.bf16.msra.mxu0 %v449
        %2116 = vmatprep.subr.bf16.mxu0 %v448
        %2117 = vmatpush2.bf16.msra.mxu0 %v447
        %2118 = vmatprep.mubr.bf16.mxu0 %v2067
        %2119 = vmatmul.mubr.bf16.gmra.mxu0 %v2066
        %v2120 = vpop.f32.mrf.mxu0
        %v2121 = vadd.f32 %v2072, %v2120
        %v2122 = vpop.f32.mrf.mxu0
        %v2123 = vadd.f32 %v2072, %v2122
        %v2124 = vpop.f32.mrf.mxu0
        %v2125 = vadd.f32 %v2076, %v2124
        %v2126 = vpop.f32.mrf.mxu0
        %v2127 = vadd.f32 %v2076, %v2126
        %2128 = vmatprep.mubr.bf16.mxu0 %v2069
        %2129 = vmatmul.mubr.bf16.gmra.mxu0 %v2068
        %v2130 = vpop.f32.mrf.mxu0
        %v2131 = vadd.f32 %v2080, %v2130
        %v2132 = vpop.f32.mrf.mxu0
        %v2133 = vadd.f32 %v2080, %v2132
        %v2134 = vpop.f32.mrf.mxu0
        %v2135 = vadd.f32 %v2084, %v2134
        %v2136 = vpop.f32.mrf.mxu0
        %v2137 = vadd.f32 %v2084, %v2136
        %2138 = vdwg.mxu0
        %v2139 = vmax.f32 %v2121, 0.0
        %v2140 = vmax.f32 %v2123, 0.0
        %v2141 = vmax.f32 %v2125, 0.0
        %v2142 = vmax.f32 %v2127, 0.0
        %v2143 = vmax.f32 %v2131, 0.0
        %v2144 = vmax.f32 %v2133, 0.0
        %v2145 = vmax.f32 %v2135, 0.0
        %v2146 = vmax.f32 %v2137, 0.0
        %v2147 = vpack.c.bf16 %v2141, %v2139
        %v2148 = vpack.c.bf16 %v2142, %v2140
        %v2149 = vpack.c.bf16 %v2145, %v2143
        %v2150 = vpack.c.bf16 %v2146, %v2144
        %s2151 = scalar_lea.vmem [#allocation5], 176
        %v2152 = vld [vmem:[%s2151] sm:$0xf]
        %v2153 = vld [vmem:[%s2151 + $0x4] sm:$0xf]
        %v2154 = vld [vmem:[%s2151 + $0x8] sm:$0xf]
        %v2155 = vld [vmem:[%s2151 + $0xc] sm:$0xf]
        %v2160 = vunpack.c.l.b16 %v2152
        %v2161 = vunpack.c.l.b16 %v2153
        %v2162 = vunpack.c.l.b16 %v2154
        %v2163 = vunpack.c.l.b16 %v2155
        %v2164 = vpack.c.b16 %v2161, %v2160
        %v2165 = vpack.c.b16 %v2163, %v2162
        %v2167 = vsel %vm575, %v2164, 0
        %v2170 = vsel %vm575, %v2165, 0
        %2172 = vmatprep.subr.bf16.mxu0 0
        %2173 = vmatpush1.bf16.msra.mxu0 0
        %2174 = vmatprep.subr.bf16.mxu0 0
        %2175 = vmatpush1.bf16.msra.mxu0 0
        %2176 = vmatprep.subr.bf16.mxu0 0
        %2177 = vmatpush1.bf16.msra.mxu0 0
        %2178 = vmatprep.subr.bf16.mxu0 0
        %2179 = vmatpush1.bf16.msra.mxu0 0
        %2180 = vmatprep.subr.bf16.mxu0 0
        %2181 = vmatpush1.bf16.msra.mxu0 0
        %2182 = vmatprep.subr.bf16.mxu0 0
        %2183 = vmatpush1.bf16.msra.mxu0 0
        %2184 = vmatprep.subr.bf16.mxu0 %v2150
        %2185 = vmatpush1.bf16.msra.mxu0 %v2149
        %2186 = vmatprep.subr.bf16.mxu0 %v2148
        %2187 = vmatpush1.bf16.msra.mxu0 %v2147
        %2188 = vmatprep.subr.bf16.mxu0 0
        %2189 = vmatpush2.bf16.msra.mxu0 0
        %2190 = vmatprep.subr.bf16.mxu0 0
        %2191 = vmatpush2.bf16.msra.mxu0 0
        %2192 = vmatprep.subr.bf16.mxu0 0
        %2193 = vmatpush2.bf16.msra.mxu0 0
        %2194 = vmatprep.subr.bf16.mxu0 0
        %2195 = vmatpush2.bf16.msra.mxu0 0
        %2196 = vmatprep.subr.bf16.mxu0 0
        %2197 = vmatpush2.bf16.msra.mxu0 0
        %2198 = vmatprep.subr.bf16.mxu0 0
        %2199 = vmatpush2.bf16.msra.mxu0 0
        %2200 = vmatprep.subr.bf16.mxu0 0
        %2201 = vmatpush2.bf16.msra.mxu0 0
        %2202 = vmatprep.subr.bf16.mxu0 0
        %2203 = vmatpush2.bf16.msra.mxu0 0
        %2204 = vmatprep.mubr.bf16.mxu0 0
        %2205 = vmatmul.mubr.bf16.gmra.mxu0 %v2167
        %v2206 = vpop.f32.mrf.mxu0
        %v2207 = vadd.f32 0.0, %v2206
        %v2208 = vpop.f32.mrf.mxu0
        %v2209 = vadd.f32 0.0, %v2208
        %v2210 = vpop.f32.mrf.mxu0
        %v2211 = vadd.f32 0.0, %v2210
        %v2212 = vpop.f32.mrf.mxu0
        %v2213 = vadd.f32 0.0, %v2212
        %2214 = vmatprep.mubr.bf16.mxu0 0
        %2215 = vmatmul.mubr.bf16.gmra.mxu0 %v2170
        %v2216 = vpop.f32.mrf.mxu0
        %v2217 = vadd.f32 0.0, %v2216
        %v2218 = vpop.f32.mrf.mxu0
        %v2219 = vadd.f32 0.0, %v2218
        %v2220 = vpop.f32.mrf.mxu0
        %v2221 = vadd.f32 0.0, %v2220
        %v2222 = vpop.f32.mrf.mxu0
        %v2223 = vadd.f32 0.0, %v2222
        %2224 = vdwg.mxu0
        %v2225 = vpack.c.bf16 %v2211, %v2207
        %v2226 = vpack.c.bf16 %v2213, %v2209
        %v2227 = vpack.c.bf16 %v2221, %v2217
        %v2228 = vpack.c.bf16 %v2223, %v2219
        %2229 = vset.pattern.permute.xlu0 11
        %2230 = vperm.xlu0 %2229, %v260
        %v2231 = vpop.permute.xlu0 %2230
        %2233 = vset.pattern.permute.xlu0 11
        %2234 = vperm.xlu0 %2233, %v261
        %v2235 = vpop.permute.xlu0 %2234
        %2237 = vset.pattern.permute.xlu0 11
        %2238 = vperm.xlu0 %2237, %v262
        %v2239 = vpop.permute.xlu0 %2238
        %2241 = vset.pattern.permute.xlu0 11
        %2242 = vperm.xlu0 %2241, %v263
        %v2243 = vpop.permute.xlu0 %2242
        %2245 = vmatprep.subr.bf16.mxu0 %v446
        %2246 = vmatpush1.bf16.msra.mxu0 %v445
        %2247 = vmatprep.subr.bf16.mxu0 %v444
        %2248 = vmatpush1.bf16.msra.mxu0 %v443
        %2249 = vmatprep.subr.bf16.mxu0 %v442
        %2250 = vmatpush1.bf16.msra.mxu0 %v441
        %2251 = vmatprep.subr.bf16.mxu0 %v440
        %2252 = vmatpush1.bf16.msra.mxu0 %v439
        %2253 = vmatprep.subr.bf16.mxu0 %v438
        %2254 = vmatpush1.bf16.msra.mxu0 %v437
        %2255 = vmatprep.subr.bf16.mxu0 %v436
        %2256 = vmatpush1.bf16.msra.mxu0 %v435
        %2257 = vmatprep.subr.bf16.mxu0 %v434
        %2258 = vmatpush1.bf16.msra.mxu0 %v433
        %2259 = vmatprep.subr.bf16.mxu0 %v432
        %2260 = vmatpush1.bf16.msra.mxu0 %v431
        %2261 = vmatprep.subr.bf16.mxu0 %v462
        %2262 = vmatpush2.bf16.msra.mxu0 %v461
        %2263 = vmatprep.subr.bf16.mxu0 %v460
        %2264 = vmatpush2.bf16.msra.mxu0 %v459
        %2265 = vmatprep.subr.bf16.mxu0 %v458
        %2266 = vmatpush2.bf16.msra.mxu0 %v457
        %2267 = vmatprep.subr.bf16.mxu0 %v456
        %2268 = vmatpush2.bf16.msra.mxu0 %v455
        %2269 = vmatprep.subr.bf16.mxu0 %v454
        %2270 = vmatpush2.bf16.msra.mxu0 %v453
        %2271 = vmatprep.subr.bf16.mxu0 %v452
        %2272 = vmatpush2.bf16.msra.mxu0 %v451
        %2273 = vmatprep.subr.bf16.mxu0 %v450
        %2274 = vmatpush2.bf16.msra.mxu0 %v449
        %2275 = vmatprep.subr.bf16.mxu0 %v448
        %2276 = vmatpush2.bf16.msra.mxu0 %v447
        %2277 = vmatprep.mubr.bf16.mxu0 %v2226
        %2278 = vmatmul.mubr.bf16.gmra.mxu0 %v2225
        %v2279 = vpop.f32.mrf.mxu0
        %v2280 = vadd.f32 %v2231, %v2279
        %v2281 = vpop.f32.mrf.mxu0
        %v2282 = vadd.f32 %v2231, %v2281
        %v2283 = vpop.f32.mrf.mxu0
        %v2284 = vadd.f32 %v2235, %v2283
        %v2285 = vpop.f32.mrf.mxu0
        %v2286 = vadd.f32 %v2235, %v2285
        %2287 = vmatprep.mubr.bf16.mxu0 %v2228
        %2288 = vmatmul.mubr.bf16.gmra.mxu0 %v2227
        %v2289 = vpop.f32.mrf.mxu0
        %v2290 = vadd.f32 %v2239, %v2289
        %v2291 = vpop.f32.mrf.mxu0
        %v2292 = vadd.f32 %v2239, %v2291
        %v2293 = vpop.f32.mrf.mxu0
        %v2294 = vadd.f32 %v2243, %v2293
        %v2295 = vpop.f32.mrf.mxu0
        %v2296 = vadd.f32 %v2243, %v2295
        %2297 = vdwg.mxu0
        %v2298 = vmax.f32 %v2280, 0.0
        %v2299 = vmax.f32 %v2282, 0.0
        %v2300 = vmax.f32 %v2284, 0.0
        %v2301 = vmax.f32 %v2286, 0.0
        %v2302 = vmax.f32 %v2290, 0.0
        %v2303 = vmax.f32 %v2292, 0.0
        %v2304 = vmax.f32 %v2294, 0.0
        %v2305 = vmax.f32 %v2296, 0.0
        %v2306 = vpack.c.bf16 %v2300, %v2298
        %v2307 = vpack.c.bf16 %v2301, %v2299
        %v2308 = vpack.c.bf16 %v2304, %v2302
        %v2309 = vpack.c.bf16 %v2305, %v2303
        %s2310 = scalar_lea.vmem [#allocation5], 192
        %v2311 = vld [vmem:[%s2310] sm:$0xf]
        %v2312 = vld [vmem:[%s2310 + $0x4] sm:$0xf]
        %v2313 = vld [vmem:[%s2310 + $0x8] sm:$0xf]
        %v2314 = vld [vmem:[%s2310 + $0xc] sm:$0xf]
        %v2319 = vunpack.c.l.b16 %v2311
        %v2320 = vunpack.c.l.b16 %v2312
        %v2321 = vunpack.c.l.b16 %v2313
        %v2322 = vunpack.c.l.b16 %v2314
        %v2323 = vpack.c.b16 %v2320, %v2319
        %v2324 = vpack.c.b16 %v2322, %v2321
        %v2326 = vsel %vm575, %v2323, 0
        %v2329 = vsel %vm575, %v2324, 0
        %2331 = vmatprep.subr.bf16.mxu0 0
        %2332 = vmatpush1.bf16.msra.mxu0 0
        %2333 = vmatprep.subr.bf16.mxu0 0
        %2334 = vmatpush1.bf16.msra.mxu0 0
        %2335 = vmatprep.subr.bf16.mxu0 0
        %2336 = vmatpush1.bf16.msra.mxu0 0
        %2337 = vmatprep.subr.bf16.mxu0 0
        %2338 = vmatpush1.bf16.msra.mxu0 0
        %2339 = vmatprep.subr.bf16.mxu0 0
        %2340 = vmatpush1.bf16.msra.mxu0 0
        %2341 = vmatprep.subr.bf16.mxu0 0
        %2342 = vmatpush1.bf16.msra.mxu0 0
        %2343 = vmatprep.subr.bf16.mxu0 %v2309
        %2344 = vmatpush1.bf16.msra.mxu0 %v2308
        %2345 = vmatprep.subr.bf16.mxu0 %v2307
        %2346 = vmatpush1.bf16.msra.mxu0 %v2306
        %2347 = vmatprep.subr.bf16.mxu0 0
        %2348 = vmatpush2.bf16.msra.mxu0 0
        %2349 = vmatprep.subr.bf16.mxu0 0
        %2350 = vmatpush2.bf16.msra.mxu0 0
        %2351 = vmatprep.subr.bf16.mxu0 0
        %2352 = vmatpush2.bf16.msra.mxu0 0
        %2353 = vmatprep.subr.bf16.mxu0 0
        %2354 = vmatpush2.bf16.msra.mxu0 0
        %2355 = vmatprep.subr.bf16.mxu0 0
        %2356 = vmatpush2.bf16.msra.mxu0 0
        %2357 = vmatprep.subr.bf16.mxu0 0
        %2358 = vmatpush2.bf16.msra.mxu0 0
        %2359 = vmatprep.subr.bf16.mxu0 0
        %2360 = vmatpush2.bf16.msra.mxu0 0
        %2361 = vmatprep.subr.bf16.mxu0 0
        %2362 = vmatpush2.bf16.msra.mxu0 0
        %2363 = vmatprep.mubr.bf16.mxu0 0
        %2364 = vmatmul.mubr.bf16.gmra.mxu0 %v2326
        %v2365 = vpop.f32.mrf.mxu0
        %v2366 = vadd.f32 0.0, %v2365
        %v2367 = vpop.f32.mrf.mxu0
        %v2368 = vadd.f32 0.0, %v2367
        %v2369 = vpop.f32.mrf.mxu0
        %v2370 = vadd.f32 0.0, %v2369
        %v2371 = vpop.f32.mrf.mxu0
        %v2372 = vadd.f32 0.0, %v2371
        %2373 = vmatprep.mubr.bf16.mxu0 0
        %2374 = vmatmul.mubr.bf16.gmra.mxu0 %v2329
        %v2375 = vpop.f32.mrf.mxu0
        %v2376 = vadd.f32 0.0, %v2375
        %v2377 = vpop.f32.mrf.mxu0
        %v2378 = vadd.f32 0.0, %v2377
        %v2379 = vpop.f32.mrf.mxu0
        %v2380 = vadd.f32 0.0, %v2379
        %v2381 = vpop.f32.mrf.mxu0
        %v2382 = vadd.f32 0.0, %v2381
        %2383 = vdwg.mxu0
        %v2384 = vpack.c.bf16 %v2370, %v2366
        %v2385 = vpack.c.bf16 %v2372, %v2368
        %v2386 = vpack.c.bf16 %v2380, %v2376
        %v2387 = vpack.c.bf16 %v2382, %v2378
        %2388 = vset.pattern.permute.xlu0 12
        %2389 = vperm.xlu0 %2388, %v260
        %v2390 = vpop.permute.xlu0 %2389
        %2392 = vset.pattern.permute.xlu0 12
        %2393 = vperm.xlu0 %2392, %v261
        %v2394 = vpop.permute.xlu0 %2393
        %2395 = vset.pattern.permute.xlu0 12
        %2396 = vperm.xlu0 %2395, %v262
        %v2397 = vpop.permute.xlu0 %2396
        %2398 = vset.pattern.permute.xlu0 12
        %2399 = vperm.xlu0 %2398, %v263
        %v2400 = vpop.permute.xlu0 %2399
        %2401 = vmatprep.subr.bf16.mxu0 %v446
        %2402 = vmatpush1.bf16.msra.mxu0 %v445
        %2403 = vmatprep.subr.bf16.mxu0 %v444
        %2404 = vmatpush1.bf16.msra.mxu0 %v443
        %2405 = vmatprep.subr.bf16.mxu0 %v442
        %2406 = vmatpush1.bf16.msra.mxu0 %v441
        %2407 = vmatprep.subr.bf16.mxu0 %v440
        %2408 = vmatpush1.bf16.msra.mxu0 %v439
        %2409 = vmatprep.subr.bf16.mxu0 %v438
        %2410 = vmatpush1.bf16.msra.mxu0 %v437
        %2411 = vmatprep.subr.bf16.mxu0 %v436
        %2412 = vmatpush1.bf16.msra.mxu0 %v435
        %2413 = vmatprep.subr.bf16.mxu0 %v434
        %2414 = vmatpush1.bf16.msra.mxu0 %v433
        %2415 = vmatprep.subr.bf16.mxu0 %v432
        %2416 = vmatpush1.bf16.msra.mxu0 %v431
        %2417 = vmatprep.subr.bf16.mxu0 %v462
        %2418 = vmatpush2.bf16.msra.mxu0 %v461
        %2419 = vmatprep.subr.bf16.mxu0 %v460
        %2420 = vmatpush2.bf16.msra.mxu0 %v459
        %2421 = vmatprep.subr.bf16.mxu0 %v458
        %2422 = vmatpush2.bf16.msra.mxu0 %v457
        %2423 = vmatprep.subr.bf16.mxu0 %v456
        %2424 = vmatpush2.bf16.msra.mxu0 %v455
        %2425 = vmatprep.subr.bf16.mxu0 %v454
        %2426 = vmatpush2.bf16.msra.mxu0 %v453
        %2427 = vmatprep.subr.bf16.mxu0 %v452
        %2428 = vmatpush2.bf16.msra.mxu0 %v451
        %2429 = vmatprep.subr.bf16.mxu0 %v450
        %2430 = vmatpush2.bf16.msra.mxu0 %v449
        %2431 = vmatprep.subr.bf16.mxu0 %v448
        %2432 = vmatpush2.bf16.msra.mxu0 %v447
        %2433 = vmatprep.mubr.bf16.mxu0 %v2385
        %2434 = vmatmul.mubr.bf16.gmra.mxu0 %v2384
        %v2435 = vpop.f32.mrf.mxu0
        %v2436 = vadd.f32 %v2390, %v2435
        %v2437 = vpop.f32.mrf.mxu0
        %v2438 = vadd.f32 %v2390, %v2437
        %v2439 = vpop.f32.mrf.mxu0
        %v2440 = vpop.f32.mrf.mxu0
        %2441 = vmatprep.mubr.bf16.mxu0 %v2387
        %2442 = vmatmul.mubr.bf16.gmra.mxu0 %v2386
        %v2443 = vpop.f32.mrf.mxu0
        %v2444 = vpop.f32.mrf.mxu0
        %v2445 = vpop.f32.mrf.mxu0
        %v2446 = vpop.f32.mrf.mxu0
        %2447 = vdwg.mxu0
        %v2448 = vxor.u32 %v2436, 2147483648
        %v2449 = vxor.u32 %v2438, 2147483648
        %v2450 = vmul.f32 %v2448, 1.442695
        %v2451 = vpow.pop %v2450
        %v2452 = vmul.f32 %v2449, 1.442695
        %v2453 = vpow.pop %v2452
        %v2454 = vadd.f32 %v2451, 1.0
        %v2455 = vadd.f32 %v2453, 1.0
        %v2456 = vrcp.pop %v2454
        %v2457 = vmul.f32 1.0, %v2456
        %v2458 = vrcp.pop %v2455
        %v2459 = vmul.f32 1.0, %v2458
        %v2462 = vcombine.low %v2457, %v2459
        %v2464 = vunpack.c.l.s4 1966171168
        %v2465 = vunpack.c.0.s8 %v2464
        %v2466 = vlaneseq
        %v2467 = vshrl.u32 %v2466, 7
        %v2468 = vsub.s32 %v2465, %v2467
        %v2469 = vrot.slane %v2462, %v2468
        %v2471 = vunpack.c.l.s4 1966171168
        %v2472 = vunpack.c.0.s8 %v2471
        %v2473 = vlaneseq
        %v2474 = vshrl.u32 %v2473, 7
        %v2475 = vsub.s32 %v2472, %v2474
        %v2476 = vrot.slane %v2469, %v2475
        %v2478 = vlaneseq
        %vm2479 = vcmp.ge.s32.totalorder %v2478, 0
        %vm2480 = vcmp.lt.s32.totalorder %v2478, 256
        %vm2481 = vmand %vm2479, %vm2480
        %2482 = vst.msk [vmem:[%s219] sm:$0x3] %vm2481, %v2476
        %s2483 = sand.u32 %s117, 1
        %s2484 = scalar_lea.sflag [#allocation4], %s2483
        %s2485 = sand.u32 %s117, 1
        %s2486 = smul.addr %s2485, 2
        %s2487 = scalar_lea.vmem [#allocation7], %s2486
        // Predicated region
        $region45: #{tpu_custom_call.1} parent=35 // pred_check
          %p2488 = pneg %p127
        $region46: #{tpu_custom_call.1} parent=35 // pred_check_branch
          %2490 = sbr.rel (%p2488) target = $region48
        $region47: #{tpu_custom_call.1} parent=35 // pred_region
          %s2491 = smul.u32 2, %s20
          %s2493 = ssub.s32 32, 32
          %2494 = vsyncadd %s2484, %s2493
          %s2495 = smul.addr %s2491, 16
          %s2496 = scalar_lea.hbm %s4, %s2495
          %s2498 = sshll.u32 %s2487, 4
          %s2499 = int_to_ptr.vmem [resolvable:$true] %s2498
          %2501 = dma.vmem_to_hbm [thread:$0]  %s2499, 32, %s2496, %s2484
        $region48: #{tpu_custom_call.1} parent=35 // pred_fallthru
          _
      $region36: #{tpu_custom_call.1} parent=5 // pred_fallthru
        _
      %p2502 = scmp.le.s32.totalorder 2, %s15
      // Predicated region
      $region49: #{tpu_custom_call.1} parent=5 // pred_check
        %p2503 = pneg %p2502
      $region50: #{tpu_custom_call.1} parent=5 // pred_check_branch
        %2505 = sbr.rel (%p2503) target = $region52
      $region51: #{tpu_custom_call.1} parent=5 // pred_region
        %s2506 = ssub.s32 %s15, 2
        // Predicated region
        $region53: #{tpu_custom_call.1} parent=51 // pred_check
          %p2507 = pneg %p133
        $region54: #{tpu_custom_call.1} parent=51 // pred_check_branch
          %2509 = sbr.rel (%p2507) target = $region56
        $region55: #{tpu_custom_call.1} parent=51 // pred_region
          %s2510 = sand.u32 %s118, 1
          %s2511 = scalar_lea.sflag [#allocation4], %s2510
          %s2512 = sand.u32 %s118, 1
          %s2513 = smul.addr %s2512, 2
          %s2514 = scalar_lea.vmem [#allocation7], %s2513
          %2515 = dma.done %s2511, 32
        $region56: #{tpu_custom_call.1} parent=51 // pred_fallthru
          _
      $region52: #{tpu_custom_call.1} parent=5 // pred_fallthru
        _
    $region6: #{tpu_custom_call.1} parent=1 // loop_footer
      %s19 = sadd.s32 1, %s15
    $region7: #{tpu_custom_call.1} parent=1 // loop_footer_branch
      %14 = sbr.rel target = $region3
    $region8: #{tpu_custom_call.1} parent=1 // loop_exit
      _
    %2516 = vsyncpa [#allocation3], 1
    %s2517 = scalar_lea.sflag [#allocation3], 1
    %2518 = vsyncpa %s2517, 1
    %2519 = vsyncpa [#allocation6], 1
    %2520 = vsyncpa [#allocation4], 1
    %s2521 = scalar_lea.sflag [#allocation4], 1
    %2522 = vsyncpa %s2521, 1

</llo_original>
